<compile_context>
chip_gen: v7x
topology: tpu7x:2x2x1
jax: 0.10.0
libtpu: 0.0.40
codegen_flags: <defaults>
</compile_context>

<pallas_src>
import functools

import jax
import jax.numpy as jnp
from jax.experimental import pallas as pl
from jax.experimental.pallas import tpu as pltpu

LAYERS = [2, 20, 20, 20, 20, 2]

# Normalization bounds (in the original script lb/ub come from X_train min/max;
# here chosen as deterministic constants).  UB must differ from LB.
LB = 0.0
UB = 1.0
INV_RANGE = 1.0 / (UB - LB)


def _mlp_kernel(x_ref, y_ref,
                w1_ref, b1_ref,
                w2_ref, b2_ref,
                w3_ref, b3_ref,
                w4_ref, b4_ref,
                w5_ref, b5_ref,
                o_ref):
    # Normalization: (v - lb) / (ub - lb)   -> (1, block_n), batch on lanes.
    xn = (x_ref[...] - LB) * INV_RANGE
    yn = (y_ref[...] - LB) * INV_RANGE

    # Layer 1 (in=2): degenerate-K matmul replaced by two broadcast FMAs (VPU).
    w1 = w1_ref[...]                                      # (20, 2)
    a = jnp.tanh(w1[:, 0:1] * xn + w1[:, 1:2] * yn + b1_ref[...])   # (20, block_n)

    # Hidden layers: tanh(W @ a + b); activations stay lane-dense (20, block_n).
    a = jnp.tanh(jnp.dot(w2_ref[...], a, preferred_element_type=jnp.float32)
                 + b2_ref[...])
    a = jnp.tanh(jnp.dot(w3_ref[...], a, preferred_element_type=jnp.float32)
                 + b3_ref[...])
    a = jnp.tanh(jnp.dot(w4_ref[...], a, preferred_element_type=jnp.float32)
                 + b4_ref[...])

    # Final linear layer (no activation): (2, block_n), lane-dense output tile.
    o_ref[...] = (jnp.dot(w5_ref[...], a, preferred_element_type=jnp.float32)
                  + b5_ref[...])


def init_params(key, layers):
    """Xavier-normal weights (gain=1.0), zero biases — matches the torch init.

    Weights are stored as (out_features, in_features) (same as torch), biases
    as (out_features, 1) so they broadcast against (out, block_n) activations.
    """
    params = []
    for i in range(len(layers) - 1):
        fan_in, fan_out = layers[i], layers[i + 1]
        key, sub = jax.random.split(key)
        std = (2.0 / (fan_in + fan_out)) ** 0.5
        w = jax.random.normal(sub, (fan_out, fan_in), dtype=jnp.float32) * std
        b = jnp.zeros((fan_out, 1), dtype=jnp.float32)
        params.append((w, b))
    return params


@functools.partial(jax.jit, static_argnames=("block_n",))
def sequential_model_forward(x, y, params, block_n=512):
    """x, y: (N,) float arrays. Returns (N, 2) float32 (psi, p)."""
    n = x.shape[0]
    n_blocks = pl.cdiv(n, block_n)
    n_pad = n_blocks * block_n

    # Pass x / y as two (1, N) rows: batch on lanes, no (N, 2) stack in HBM.
    xp = jnp.pad(x.astype(jnp.float32), (0, n_pad - n)).reshape(1, n_pad)
    yp = jnp.pad(y.astype(jnp.float32), (0, n_pad - n)).reshape(1, n_pad)

    flat = []
    in_specs = [
        pl.BlockSpec((1, block_n), lambda i: (0, i)),   # x row block
        pl.BlockSpec((1, block_n), lambda i: (0, i)),   # y row block
    ]
    weight_bytes = 0
    for (w, b) in params:
        flat.extend([w, b])
        in_specs.append(pl.BlockSpec(w.shape, lambda i: (0, 0)))  # resident weight
        in_specs.append(pl.BlockSpec(b.shape, lambda i: (0, 0)))  # resident bias
        weight_bytes += 4 * (w.size + b.size)

    # Advisory cost hint for XLA's scheduler.
    h = LAYERS[1]
    flops = 2 * n_pad * (LAYERS[0] * h + 3 * h * h + h * LAYERS[-1])
    transcendentals = 4 * h * n_pad
    bytes_accessed = 16 * n_pad + weight_bytes

    out_t = pl.pallas_call(
        _mlp_kernel,
        out_shape=jax.ShapeDtypeStruct((LAYERS[-1], n_pad), jnp.float32),
        grid=(n_blocks,),
        in_specs=in_specs,
        out_specs=pl.BlockSpec((LAYERS[-1], block_n), lambda i: (0, i)),
        compiler_params=pltpu.CompilerParams(
            dimension_semantics=("parallel",)),
        cost_estimate=pl.CostEstimate(
            flops=flops,
            transcendentals=transcendentals,
            bytes_accessed=bytes_accessed),
    )(xp, yp, *flat)

    # Kernel output is (2, N_pad) for lane-dense stores; return torch layout (N, 2).
    return out_t.T[:n]


def reference_forward(x, y, params):
    a = jnp.stack([x, y], axis=1).astype(jnp.float32)
    a = (a - LB) / (UB - LB)
    for (w, b) in params[:-1]:
        a = jnp.tanh(a @ w.T + b[:, 0])
    w, b = params[-1]
    return a @ w.T + b[:, 0]


if __name__ == "__main__":
    key = jax.random.PRNGKey(0)
    k_params, k_x, k_y = jax.random.split(key, 3)

    # Small batch of collocation points; not a multiple of block_n on purpose
    # (exercises the padded / sliced path).  block_n=512 -> 4 grid steps.
    N = 2000
    params = init_params(k_params, LAYERS)
    x = jax.random.uniform(k_x, (N,), dtype=jnp.float32)
    y = jax.random.uniform(k_y, (N,), dtype=jnp.float32)

    out = sequential_model_forward(x, y, params)
    out = jax.block_until_ready(out)

    ref = reference_forward(x, y, params)
    assert out.shape == (N, 2) and out.dtype == jnp.float32
    assert jnp.allclose(out, ref, atol=1e-5, rtol=1e-5), "mismatch vs reference"

    # TODO(synk): loss_PDE / autograd-based PDE residuals, LBFGS optimization and
    # the file I/O are training-time logic and are not part of the forward kernel.
    print("KERNEL_OK")
</pallas_src>

<mosaic_0001>
module attributes {stable_mosaic.version = 11 : i64} {
  func.func @_mlp_kernel(%arg0: i32, %arg1: memref<1x512xf32, #tpu.memory_space<vmem>>, %arg2: memref<1x512xf32, #tpu.memory_space<vmem>>, %arg3: memref<20x2xf32, #tpu.memory_space<vmem>>, %arg4: memref<20x1xf32, #tpu.memory_space<vmem>>, %arg5: memref<20x20xf32, #tpu.memory_space<vmem>>, %arg6: memref<20x1xf32, #tpu.memory_space<vmem>>, %arg7: memref<20x20xf32, #tpu.memory_space<vmem>>, %arg8: memref<20x1xf32, #tpu.memory_space<vmem>>, %arg9: memref<20x20xf32, #tpu.memory_space<vmem>>, %arg10: memref<20x1xf32, #tpu.memory_space<vmem>>, %arg11: memref<2x20xf32, #tpu.memory_space<vmem>>, %arg12: memref<2x1xf32, #tpu.memory_space<vmem>>, %arg13: memref<2x512xf32, #tpu.memory_space<vmem>>) attributes {dimension_semantics = [#tpu.dimension_semantics<parallel>], iteration_bounds = array<i64: 4>, scalar_prefetch = 0 : i64, scratch_operands = 0 : i64, tpu.core_type = #tpu.core_type<tc>, window_params = [{transform_indices = @transform_0, window_bounds = array<i64: 1, 512>}, {transform_indices = @transform_1, window_bounds = array<i64: 1, 512>}, {pipeline_mode = #tpu.pipeline_mode<synchronous>, transform_indices = @transform_2, window_bounds = array<i64: 20, 2>}, {pipeline_mode = #tpu.pipeline_mode<synchronous>, transform_indices = @transform_3, window_bounds = array<i64: 20, 1>}, {pipeline_mode = #tpu.pipeline_mode<synchronous>, transform_indices = @transform_4, window_bounds = array<i64: 20, 20>}, {pipeline_mode = #tpu.pipeline_mode<synchronous>, transform_indices = @transform_5, window_bounds = array<i64: 20, 1>}, {pipeline_mode = #tpu.pipeline_mode<synchronous>, transform_indices = @transform_6, window_bounds = array<i64: 20, 20>}, {pipeline_mode = #tpu.pipeline_mode<synchronous>, transform_indices = @transform_7, window_bounds = array<i64: 20, 1>}, {pipeline_mode = #tpu.pipeline_mode<synchronous>, transform_indices = @transform_8, window_bounds = array<i64: 20, 20>}, {pipeline_mode = #tpu.pipeline_mode<synchronous>, transform_indices = @transform_9, window_bounds = array<i64: 20, 1>}, {pipeline_mode = #tpu.pipeline_mode<synchronous>, transform_indices = @transform_10, window_bounds = array<i64: 2, 20>}, {pipeline_mode = #tpu.pipeline_mode<synchronous>, transform_indices = @transform_11, window_bounds = array<i64: 2, 1>}, {transform_indices = @transform_12, window_bounds = array<i64: 2, 512>}]} {
    %c0 = arith.constant 0 : index
    %c0_0 = arith.constant 0 : index
    %0 = vector.load %arg1[%c0, %c0_0] : memref<1x512xf32, #tpu.memory_space<vmem>>, vector<1x512xf32>
    %cst = arith.constant 0.000000e+00 : f32
    %1 = vector.broadcast %cst : f32 to vector<1x512xf32>
    %2 = arith.subf %0, %1 : vector<1x512xf32>
    %cst_1 = arith.constant 1.000000e+00 : f32
    %3 = vector.broadcast %cst_1 : f32 to vector<1x512xf32>
    %4 = arith.mulf %2, %3 : vector<1x512xf32>
    %c0_2 = arith.constant 0 : index
    %c0_3 = arith.constant 0 : index
    %5 = vector.load %arg2[%c0_2, %c0_3] : memref<1x512xf32, #tpu.memory_space<vmem>>, vector<1x512xf32>
    %cst_4 = arith.constant 0.000000e+00 : f32
    %6 = vector.broadcast %cst_4 : f32 to vector<1x512xf32>
    %7 = arith.subf %5, %6 : vector<1x512xf32>
    %cst_5 = arith.constant 1.000000e+00 : f32
    %8 = vector.broadcast %cst_5 : f32 to vector<1x512xf32>
    %9 = arith.mulf %7, %8 : vector<1x512xf32>
    %c0_6 = arith.constant 0 : index
    %c0_7 = arith.constant 0 : index
    %10 = vector.load %arg3[%c0_6, %c0_7] : memref<20x2xf32, #tpu.memory_space<vmem>>, vector<20x2xf32>
    %11 = vector.extract_strided_slice %10 {offsets = [0, 0], sizes = [20, 1], strides = [1, 1]} : vector<20x2xf32> to vector<20x1xf32>
    %12 = vector.broadcast %11 : vector<20x1xf32> to vector<20x512xf32>
    %13 = vector.broadcast %4 : vector<1x512xf32> to vector<20x512xf32>
    %14 = arith.mulf %12, %13 : vector<20x512xf32>
    %15 = vector.extract_strided_slice %10 {offsets = [0, 1], sizes = [20, 1], strides = [1, 1]} : vector<20x2xf32> to vector<20x1xf32>
    %16 = vector.broadcast %15 : vector<20x1xf32> to vector<20x512xf32>
    %17 = vector.broadcast %9 : vector<1x512xf32> to vector<20x512xf32>
    %18 = arith.mulf %16, %17 : vector<20x512xf32>
    %19 = arith.addf %14, %18 : vector<20x512xf32>
    %c0_8 = arith.constant 0 : index
    %c0_9 = arith.constant 0 : index
    %20 = vector.load %arg4[%c0_8, %c0_9] : memref<20x1xf32, #tpu.memory_space<vmem>>, vector<20x1xf32>
    %21 = vector.broadcast %20 : vector<20x1xf32> to vector<20x512xf32>
    %22 = arith.addf %19, %21 : vector<20x512xf32>
    %23 = math.tanh %22 : vector<20x512xf32>
    %c0_10 = arith.constant 0 : index
    %c0_11 = arith.constant 0 : index
    %24 = vector.load %arg5[%c0_10, %c0_11] : memref<20x20xf32, #tpu.memory_space<vmem>>, vector<20x20xf32>
    %cst_12 = arith.constant dense<0.000000e+00> : vector<20x512xf32>
    %25 = tpu.matmul %24, %23, %cst_12 {dimension_numbers = #tpu.dot_dimension_numbers<[1], [0], [0], [1], [0, 0, 1, 1], [], []>} : vector<20x20xf32>, vector<20x512xf32>, vector<20x512xf32> -> vector<20x512xf32>
    %c0_13 = arith.constant 0 : index
    %c0_14 = arith.constant 0 : index
    %26 = vector.load %arg6[%c0_13, %c0_14] : memref<20x1xf32, #tpu.memory_space<vmem>>, vector<20x1xf32>
    %27 = vector.broadcast %26 : vector<20x1xf32> to vector<20x512xf32>
    %28 = arith.addf %25, %27 : vector<20x512xf32>
    %29 = math.tanh %28 : vector<20x512xf32>
    %c0_15 = arith.constant 0 : index
    %c0_16 = arith.constant 0 : index
    %30 = vector.load %arg7[%c0_15, %c0_16] : memref<20x20xf32, #tpu.memory_space<vmem>>, vector<20x20xf32>
    %cst_17 = arith.constant dense<0.000000e+00> : vector<20x512xf32>
    %31 = tpu.matmul %30, %29, %cst_17 {dimension_numbers = #tpu.dot_dimension_numbers<[1], [0], [0], [1], [0, 0, 1, 1], [], []>} : vector<20x20xf32>, vector<20x512xf32>, vector<20x512xf32> -> vector<20x512xf32>
    %c0_18 = arith.constant 0 : index
    %c0_19 = arith.constant 0 : index
    %32 = vector.load %arg8[%c0_18, %c0_19] : memref<20x1xf32, #tpu.memory_space<vmem>>, vector<20x1xf32>
    %33 = vector.broadcast %32 : vector<20x1xf32> to vector<20x512xf32>
    %34 = arith.addf %31, %33 : vector<20x512xf32>
    %35 = math.tanh %34 : vector<20x512xf32>
    %c0_20 = arith.constant 0 : index
    %c0_21 = arith.constant 0 : index
    %36 = vector.load %arg9[%c0_20, %c0_21] : memref<20x20xf32, #tpu.memory_space<vmem>>, vector<20x20xf32>
    %cst_22 = arith.constant dense<0.000000e+00> : vector<20x512xf32>
    %37 = tpu.matmul %36, %35, %cst_22 {dimension_numbers = #tpu.dot_dimension_numbers<[1], [0], [0], [1], [0, 0, 1, 1], [], []>} : vector<20x20xf32>, vector<20x512xf32>, vector<20x512xf32> -> vector<20x512xf32>
    %c0_23 = arith.constant 0 : index
    %c0_24 = arith.constant 0 : index
    %38 = vector.load %arg10[%c0_23, %c0_24] : memref<20x1xf32, #tpu.memory_space<vmem>>, vector<20x1xf32>
    %39 = vector.broadcast %38 : vector<20x1xf32> to vector<20x512xf32>
    %40 = arith.addf %37, %39 : vector<20x512xf32>
    %41 = math.tanh %40 : vector<20x512xf32>
    %c0_25 = arith.constant 0 : index
    %c0_26 = arith.constant 0 : index
    %42 = vector.load %arg11[%c0_25, %c0_26] : memref<2x20xf32, #tpu.memory_space<vmem>>, vector<2x20xf32>
    %cst_27 = arith.constant dense<0.000000e+00> : vector<2x512xf32>
    %43 = tpu.matmul %42, %41, %cst_27 {dimension_numbers = #tpu.dot_dimension_numbers<[1], [0], [0], [1], [0, 0, 1, 1], [], []>} : vector<2x20xf32>, vector<20x512xf32>, vector<2x512xf32> -> vector<2x512xf32>
    %c0_28 = arith.constant 0 : index
    %c0_29 = arith.constant 0 : index
    %44 = vector.load %arg12[%c0_28, %c0_29] : memref<2x1xf32, #tpu.memory_space<vmem>>, vector<2x1xf32>
    %45 = vector.broadcast %44 : vector<2x1xf32> to vector<2x512xf32>
    %46 = arith.addf %43, %45 : vector<2x512xf32>
    %c0_30 = arith.constant 0 : index
    %c0_31 = arith.constant 0 : index
    %47 = vector.load %arg13[%c0_30, %c0_31] : memref<2x512xf32, #tpu.memory_space<vmem>>, vector<2x512xf32>
    tpu.vector_store %arg13[%c0_30, %c0_31], %46 {strides = array<i32>} : memref<2x512xf32, #tpu.memory_space<vmem>>, vector<2x512xf32>,
    return
  }
  func.func @transform_0(%arg0: i32) -> (i32, i32) {
    %c0_i32 = arith.constant 0 : i32
    %c0_i32_0 = arith.constant 0 : i32
    return %c0_i32, %arg0 : i32, i32
  }
  func.func @transform_1(%arg0: i32) -> (i32, i32) {
    %c0_i32 = arith.constant 0 : i32
    %c0_i32_0 = arith.constant 0 : i32
    return %c0_i32, %arg0 : i32, i32
  }
  func.func @transform_2(%arg0: i32) -> (i32, i32) {
    %c0_i32 = arith.constant 0 : i32
    %c0_i32_0 = arith.constant 0 : i32
    %c0_i32_1 = arith.constant 0 : i32
    return %c0_i32, %c0_i32_0 : i32, i32
  }
  func.func @transform_3(%arg0: i32) -> (i32, i32) {
    %c0_i32 = arith.constant 0 : i32
    %c0_i32_0 = arith.constant 0 : i32
    %c0_i32_1 = arith.constant 0 : i32
    return %c0_i32, %c0_i32_0 : i32, i32
  }
  func.func @transform_4(%arg0: i32) -> (i32, i32) {
    %c0_i32 = arith.constant 0 : i32
    %c0_i32_0 = arith.constant 0 : i32
    %c0_i32_1 = arith.constant 0 : i32
    return %c0_i32, %c0_i32_0 : i32, i32
  }
  func.func @transform_5(%arg0: i32) -> (i32, i32) {
    %c0_i32 = arith.constant 0 : i32
    %c0_i32_0 = arith.constant 0 : i32
    %c0_i32_1 = arith.constant 0 : i32
    return %c0_i32, %c0_i32_0 : i32, i32
  }
  func.func @transform_6(%arg0: i32) -> (i32, i32) {
    %c0_i32 = arith.constant 0 : i32
    %c0_i32_0 = arith.constant 0 : i32
    %c0_i32_1 = arith.constant 0 : i32
    return %c0_i32, %c0_i32_0 : i32, i32
  }
  func.func @transform_7(%arg0: i32) -> (i32, i32) {
    %c0_i32 = arith.constant 0 : i32
    %c0_i32_0 = arith.constant 0 : i32
    %c0_i32_1 = arith.constant 0 : i32
    return %c0_i32, %c0_i32_0 : i32, i32
  }
  func.func @transform_8(%arg0: i32) -> (i32, i32) {
    %c0_i32 = arith.constant 0 : i32
    %c0_i32_0 = arith.constant 0 : i32
    %c0_i32_1 = arith.constant 0 : i32
    return %c0_i32, %c0_i32_0 : i32, i32
  }
  func.func @transform_9(%arg0: i32) -> (i32, i32) {
    %c0_i32 = arith.constant 0 : i32
    %c0_i32_0 = arith.constant 0 : i32
    %c0_i32_1 = arith.constant 0 : i32
    return %c0_i32, %c0_i32_0 : i32, i32
  }
  func.func @transform_10(%arg0: i32) -> (i32, i32) {
    %c0_i32 = arith.constant 0 : i32
    %c0_i32_0 = arith.constant 0 : i32
    %c0_i32_1 = arith.constant 0 : i32
    return %c0_i32, %c0_i32_0 : i32, i32
  }
  func.func @transform_11(%arg0: i32) -> (i32, i32) {
    %c0_i32 = arith.constant 0 : i32
    %c0_i32_0 = arith.constant 0 : i32
    %c0_i32_1 = arith.constant 0 : i32
    return %c0_i32, %c0_i32_0 : i32, i32
  }
  func.func @transform_12(%arg0: i32) -> (i32, i32) {
    %c0_i32 = arith.constant 0 : i32
    %c0_i32_0 = arith.constant 0 : i32
    return %c0_i32, %arg0 : i32, i32
  }
}

</mosaic_0001>

<llo_original>
// kernel: sequential_model_forward.1
$region0: #{sequential_model_forward.1}
  #allocation0 [shape = 'u32[]', space=smem, size = 0x4, offset = 0x4, fixed_abs, tag = 'smem constant byte address 0x4 - core index']
  #allocation1 [shape = 'u32[144,128]{1,0:T(1,128)}', space=vmem, size = 0x12000, scoped, tag = 'internal scratch']
  %s0 = inlined_call_operand.vmem [shape: f32[1,2048], index: 0, kind: input, shape index: {}]
  %s1 = inlined_call_operand.vmem [shape: f32[1,2048], index: 1, kind: input, shape index: {}]
  %s2 = inlined_call_operand.vmem [shape: f32[20,2], index: 2, kind: input, shape index: {}]
  %s3 = inlined_call_operand.vmem [shape: f32[20,1], index: 3, kind: input, shape index: {}]
  %s4 = inlined_call_operand.vmem [shape: f32[20,20], index: 4, kind: input, shape index: {}]
  %s5 = inlined_call_operand.vmem [shape: f32[20,1], index: 5, kind: input, shape index: {}]
  %s6 = inlined_call_operand.vmem [shape: f32[20,20], index: 6, kind: input, shape index: {}]
  %s7 = inlined_call_operand.vmem [shape: f32[20,1], index: 7, kind: input, shape index: {}]
  %s8 = inlined_call_operand.vmem [shape: f32[20,20], index: 8, kind: input, shape index: {}]
  %s9 = inlined_call_operand.vmem [shape: f32[20,1], index: 9, kind: input, shape index: {}]
  %s10 = inlined_call_operand.vmem [shape: f32[2,20], index: 10, kind: input, shape index: {}]
  %s11 = inlined_call_operand.vmem [shape: f32[2,1], index: 11, kind: input, shape index: {}]
  %s12 = inlined_call_operand.hbm [shape: f32[2,2048], index: 12, kind: output, shape index: {}]
  %s13 = sld [smem:[#allocation0]]
  $region81: #{sequential_model_forward.1} parent=0
    _
  %s15 = ssub.s32 1, %s13
  %s16 = scalar_select 0, %s15, %s13
  $region1: #{sequential_model_forward.1} parent=0
    #allocation2 [shape = 'u8[8192]{0}', space=vmem, size = 0x2000, scoped, tag = 'output window, operand 0']
    #allocation3 [shape = 's32[2]{0}', space=sflag, size = 0x8, scoped, tag = 'scoped memory for sequential_model_forward.1']
    %17 = vsyncpa [#allocation3], 0
    %s18 = scalar_lea.sflag [#allocation3], 1
    %19 = vsyncpa %s18, 0
    loop: start=0, step=1, limit=6
    $region2: #{sequential_model_forward.1} parent=1 // loop_pre_header
      _
    $region3: #{sequential_model_forward.1} parent=1 // loop_header
      %s21 = sphi 0, %s25
      %p22 = scmp.ge.s32.totalorder %s21, 6
      %s31 = sphi 0, %s33
      %s34 = sphi 0, %s31
      %s35 = sphi 0, %s34
      %s51 = sphi 0, %s35
      %s57 = sphi 0, %s59
      %s60 = sphi 0, %s57
      %s61 = sphi 0, %s60
      %s77 = sphi 0, %s61
      %s81 = sphi 0, %s81
      %s83 = sphi 0, %s81
      %s84 = sphi 0, %s83
      %s98 = sphi 0, %s84
      %s102 = sphi 0, %s102
      %s104 = sphi 0, %s102
      %s105 = sphi 0, %s104
      %s119 = sphi 0, %s105
      %s123 = sphi 0, %s123
      %s125 = sphi 0, %s123
      %s126 = sphi 0, %s125
      %s140 = sphi 0, %s126
      %s144 = sphi 0, %s144
      %s146 = sphi 0, %s144
      %s147 = sphi 0, %s146
      %s161 = sphi 0, %s147
      %s165 = sphi 0, %s165
      %s167 = sphi 0, %s165
      %s168 = sphi 0, %s167
      %s182 = sphi 0, %s168
      %s186 = sphi 0, %s186
      %s188 = sphi 0, %s186
      %s189 = sphi 0, %s188
      %s203 = sphi 0, %s189
      %s207 = sphi 0, %s207
      %s209 = sphi 0, %s207
      %s210 = sphi 0, %s209
      %s224 = sphi 0, %s210
      %s228 = sphi 0, %s228
      %s230 = sphi 0, %s228
      %s231 = sphi 0, %s230
      %s245 = sphi 0, %s231
      %s249 = sphi 0, %s249
      %s251 = sphi 0, %s249
      %s252 = sphi 0, %s251
      %s266 = sphi 0, %s252
      %s270 = sphi 0, %s270
      %s272 = sphi 0, %s270
      %s273 = sphi 0, %s272
      %s287 = sphi 0, %s273
      %s293 = sphi 0, %s295
      %s296 = sphi 0, %s293
      %s297 = sphi 0, %s296
      %s313 = sphi 0, %s297
    $region4: #{sequential_model_forward.1} parent=1 // loop_header_branch
      %24 = sbr.rel (%p22) target = $region8
    $region5: #{sequential_model_forward.1} parent=1 // loop_body
      %s26 = ssub.s32 %s21, 1
      %s27 = ssub.s32 %s21, 2
      %s28 = sadd.s32 %s21, 1
      %s29 = ssub.s32 %s21, %s28
      %p30 = scmp.eq.s32.totalorder %s29, 0
      %s32 = sadd.s32 %s31, 1
      %s33 = scalar_select %p30, %s31, %s32
      %p36 = pneg %p30
      %p37 = scmp.eq.s32.totalorder %s21, 3
      %p38 = por %p36, %p37
      %p39 = scmp.ne.s32.totalorder %s31, %s34
      %p40 = scmp.eq.s32.totalorder %s21, 0
      %p41 = por %p39, %p40
      %p42 = scmp.ne.s32.totalorder %s31, %s34
      %p43 = scmp.eq.s32.totalorder %s26, 3
      %p44 = por %p42, %p43
      %p45 = scmp.ne.s32.totalorder %s34, %s35
      %p46 = scmp.eq.s32.totalorder %s26, 0
      %p47 = por %p45, %p46
      %p48 = scmp.ne.s32.totalorder %s34, %s35
      %p49 = scmp.eq.s32.totalorder %s27, 3
      %p50 = por %p48, %p49
      %p52 = scmp.ne.s32.totalorder %s35, %s51
      %p53 = scmp.eq.s32.totalorder %s27, 0
      %p54 = por %p52, %p53
      %s55 = ssub.s32 %s21, %s28
      %p56 = scmp.eq.s32.totalorder %s55, 0
      %s58 = sadd.s32 %s57, 1
      %s59 = scalar_select %p56, %s57, %s58
      %p62 = pneg %p56
      %p63 = scmp.eq.s32.totalorder %s21, 3
      %p64 = por %p62, %p63
      %p65 = scmp.ne.s32.totalorder %s57, %s60
      %p66 = scmp.eq.s32.totalorder %s21, 0
      %p67 = por %p65, %p66
      %p68 = scmp.ne.s32.totalorder %s57, %s60
      %p69 = scmp.eq.s32.totalorder %s26, 3
      %p70 = por %p68, %p69
      %p71 = scmp.ne.s32.totalorder %s60, %s61
      %p72 = scmp.eq.s32.totalorder %s26, 0
      %p73 = por %p71, %p72
      %p74 = scmp.ne.s32.totalorder %s60, %s61
      %p75 = scmp.eq.s32.totalorder %s27, 3
      %p76 = por %p74, %p75
      %p78 = scmp.ne.s32.totalorder %s61, %s77
      %p79 = scmp.eq.s32.totalorder %s27, 0
      %p80 = por %p78, %p79
      %s82 = sadd.s32 %s81, 1
      %p85 = scmp.eq.s32.totalorder %s21, 3
      %p86 = scmp.ne.s32.totalorder %s81, %s83
      %p87 = scmp.eq.s32.totalorder %s21, 0
      %p88 = por %p86, %p87
      %p89 = scmp.ne.s32.totalorder %s81, %s83
      %p90 = scmp.eq.s32.totalorder %s26, 3
      %p91 = por %p89, %p90
      %p92 = scmp.ne.s32.totalorder %s83, %s84
      %p93 = scmp.eq.s32.totalorder %s26, 0
      %p94 = por %p92, %p93
      %p95 = scmp.ne.s32.totalorder %s83, %s84
      %p96 = scmp.eq.s32.totalorder %s27, 3
      %p97 = por %p95, %p96
      %p99 = scmp.ne.s32.totalorder %s84, %s98
      %p100 = scmp.eq.s32.totalorder %s27, 0
      %p101 = por %p99, %p100
      %s103 = sadd.s32 %s102, 1
      %p106 = scmp.eq.s32.totalorder %s21, 3
      %p107 = scmp.ne.s32.totalorder %s102, %s104
      %p108 = scmp.eq.s32.totalorder %s21, 0
      %p109 = por %p107, %p108
      %p110 = scmp.ne.s32.totalorder %s102, %s104
      %p111 = scmp.eq.s32.totalorder %s26, 3
      %p112 = por %p110, %p111
      %p113 = scmp.ne.s32.totalorder %s104, %s105
      %p114 = scmp.eq.s32.totalorder %s26, 0
      %p115 = por %p113, %p114
      %p116 = scmp.ne.s32.totalorder %s104, %s105
      %p117 = scmp.eq.s32.totalorder %s27, 3
      %p118 = por %p116, %p117
      %p120 = scmp.ne.s32.totalorder %s105, %s119
      %p121 = scmp.eq.s32.totalorder %s27, 0
      %p122 = por %p120, %p121
      %s124 = sadd.s32 %s123, 1
      %p127 = scmp.eq.s32.totalorder %s21, 3
      %p128 = scmp.ne.s32.totalorder %s123, %s125
      %p129 = scmp.eq.s32.totalorder %s21, 0
      %p130 = por %p128, %p129
      %p131 = scmp.ne.s32.totalorder %s123, %s125
      %p132 = scmp.eq.s32.totalorder %s26, 3
      %p133 = por %p131, %p132
      %p134 = scmp.ne.s32.totalorder %s125, %s126
      %p135 = scmp.eq.s32.totalorder %s26, 0
      %p136 = por %p134, %p135
      %p137 = scmp.ne.s32.totalorder %s125, %s126
      %p138 = scmp.eq.s32.totalorder %s27, 3
      %p139 = por %p137, %p138
      %p141 = scmp.ne.s32.totalorder %s126, %s140
      %p142 = scmp.eq.s32.totalorder %s27, 0
      %p143 = por %p141, %p142
      %s145 = sadd.s32 %s144, 1
      %p148 = scmp.eq.s32.totalorder %s21, 3
      %p149 = scmp.ne.s32.totalorder %s144, %s146
      %p150 = scmp.eq.s32.totalorder %s21, 0
      %p151 = por %p149, %p150
      %p152 = scmp.ne.s32.totalorder %s144, %s146
      %p153 = scmp.eq.s32.totalorder %s26, 3
      %p154 = por %p152, %p153
      %p155 = scmp.ne.s32.totalorder %s146, %s147
      %p156 = scmp.eq.s32.totalorder %s26, 0
      %p157 = por %p155, %p156
      %p158 = scmp.ne.s32.totalorder %s146, %s147
      %p159 = scmp.eq.s32.totalorder %s27, 3
      %p160 = por %p158, %p159
      %p162 = scmp.ne.s32.totalorder %s147, %s161
      %p163 = scmp.eq.s32.totalorder %s27, 0
      %p164 = por %p162, %p163
      %s166 = sadd.s32 %s165, 1
      %p169 = scmp.eq.s32.totalorder %s21, 3
      %p170 = scmp.ne.s32.totalorder %s165, %s167
      %p171 = scmp.eq.s32.totalorder %s21, 0
      %p172 = por %p170, %p171
      %p173 = scmp.ne.s32.totalorder %s165, %s167
      %p174 = scmp.eq.s32.totalorder %s26, 3
      %p175 = por %p173, %p174
      %p176 = scmp.ne.s32.totalorder %s167, %s168
      %p177 = scmp.eq.s32.totalorder %s26, 0
      %p178 = por %p176, %p177
      %p179 = scmp.ne.s32.totalorder %s167, %s168
      %p180 = scmp.eq.s32.totalorder %s27, 3
      %p181 = por %p179, %p180
      %p183 = scmp.ne.s32.totalorder %s168, %s182
      %p184 = scmp.eq.s32.totalorder %s27, 0
      %p185 = por %p183, %p184
      %s187 = sadd.s32 %s186, 1
      %p190 = scmp.eq.s32.totalorder %s21, 3
      %p191 = scmp.ne.s32.totalorder %s186, %s188
      %p192 = scmp.eq.s32.totalorder %s21, 0
      %p193 = por %p191, %p192
      %p194 = scmp.ne.s32.totalorder %s186, %s188
      %p195 = scmp.eq.s32.totalorder %s26, 3
      %p196 = por %p194, %p195
      %p197 = scmp.ne.s32.totalorder %s188, %s189
      %p198 = scmp.eq.s32.totalorder %s26, 0
      %p199 = por %p197, %p198
      %p200 = scmp.ne.s32.totalorder %s188, %s189
      %p201 = scmp.eq.s32.totalorder %s27, 3
      %p202 = por %p200, %p201
      %p204 = scmp.ne.s32.totalorder %s189, %s203
      %p205 = scmp.eq.s32.totalorder %s27, 0
      %p206 = por %p204, %p205
      %s208 = sadd.s32 %s207, 1
      %p211 = scmp.eq.s32.totalorder %s21, 3
      %p212 = scmp.ne.s32.totalorder %s207, %s209
      %p213 = scmp.eq.s32.totalorder %s21, 0
      %p214 = por %p212, %p213
      %p215 = scmp.ne.s32.totalorder %s207, %s209
      %p216 = scmp.eq.s32.totalorder %s26, 3
      %p217 = por %p215, %p216
      %p218 = scmp.ne.s32.totalorder %s209, %s210
      %p219 = scmp.eq.s32.totalorder %s26, 0
      %p220 = por %p218, %p219
      %p221 = scmp.ne.s32.totalorder %s209, %s210
      %p222 = scmp.eq.s32.totalorder %s27, 3
      %p223 = por %p221, %p222
      %p225 = scmp.ne.s32.totalorder %s210, %s224
      %p226 = scmp.eq.s32.totalorder %s27, 0
      %p227 = por %p225, %p226
      %s229 = sadd.s32 %s228, 1
      %p232 = scmp.eq.s32.totalorder %s21, 3
      %p233 = scmp.ne.s32.totalorder %s228, %s230
      %p234 = scmp.eq.s32.totalorder %s21, 0
      %p235 = por %p233, %p234
      %p236 = scmp.ne.s32.totalorder %s228, %s230
      %p237 = scmp.eq.s32.totalorder %s26, 3
      %p238 = por %p236, %p237
      %p239 = scmp.ne.s32.totalorder %s230, %s231
      %p240 = scmp.eq.s32.totalorder %s26, 0
      %p241 = por %p239, %p240
      %p242 = scmp.ne.s32.totalorder %s230, %s231
      %p243 = scmp.eq.s32.totalorder %s27, 3
      %p244 = por %p242, %p243
      %p246 = scmp.ne.s32.totalorder %s231, %s245
      %p247 = scmp.eq.s32.totalorder %s27, 0
      %p248 = por %p246, %p247
      %s250 = sadd.s32 %s249, 1
      %p253 = scmp.eq.s32.totalorder %s21, 3
      %p254 = scmp.ne.s32.totalorder %s249, %s251
      %p255 = scmp.eq.s32.totalorder %s21, 0
      %p256 = por %p254, %p255
      %p257 = scmp.ne.s32.totalorder %s249, %s251
      %p258 = scmp.eq.s32.totalorder %s26, 3
      %p259 = por %p257, %p258
      %p260 = scmp.ne.s32.totalorder %s251, %s252
      %p261 = scmp.eq.s32.totalorder %s26, 0
      %p262 = por %p260, %p261
      %p263 = scmp.ne.s32.totalorder %s251, %s252
      %p264 = scmp.eq.s32.totalorder %s27, 3
      %p265 = por %p263, %p264
      %p267 = scmp.ne.s32.totalorder %s252, %s266
      %p268 = scmp.eq.s32.totalorder %s27, 0
      %p269 = por %p267, %p268
      %s271 = sadd.s32 %s270, 1
      %p274 = scmp.eq.s32.totalorder %s21, 3
      %p275 = scmp.ne.s32.totalorder %s270, %s272
      %p276 = scmp.eq.s32.totalorder %s21, 0
      %p277 = por %p275, %p276
      %p278 = scmp.ne.s32.totalorder %s270, %s272
      %p279 = scmp.eq.s32.totalorder %s26, 3
      %p280 = por %p278, %p279
      %p281 = scmp.ne.s32.totalorder %s272, %s273
      %p282 = scmp.eq.s32.totalorder %s26, 0
      %p283 = por %p281, %p282
      %p284 = scmp.ne.s32.totalorder %s272, %s273
      %p285 = scmp.eq.s32.totalorder %s27, 3
      %p286 = por %p284, %p285
      %p288 = scmp.ne.s32.totalorder %s273, %s287
      %p289 = scmp.eq.s32.totalorder %s27, 0
      %p290 = por %p288, %p289
      %s291 = ssub.s32 %s21, %s28
      %p292 = scmp.eq.s32.totalorder %s291, 0
      %s294 = sadd.s32 %s293, 1
      %s295 = scalar_select %p292, %s293, %s294
      %p298 = pneg %p292
      %p299 = scmp.eq.s32.totalorder %s21, 3
      %p300 = por %p298, %p299
      %p301 = scmp.ne.s32.totalorder %s293, %s296
      %p302 = scmp.eq.s32.totalorder %s21, 0
      %p303 = por %p301, %p302
      %p304 = scmp.ne.s32.totalorder %s293, %s296
      %p305 = scmp.eq.s32.totalorder %s26, 3
      %p306 = por %p304, %p305
      %p307 = scmp.ne.s32.totalorder %s296, %s297
      %p308 = scmp.eq.s32.totalorder %s26, 0
      %p309 = por %p307, %p308
      %p310 = scmp.ne.s32.totalorder %s296, %s297
      %p311 = scmp.eq.s32.totalorder %s27, 3
      %p312 = por %p310, %p311
      %p314 = scmp.ne.s32.totalorder %s297, %s313
      %p315 = scmp.eq.s32.totalorder %s27, 0
      %p316 = por %p314, %p315
      %p317 = scmp.le.s32.totalorder 1, %s21
      %p318 = scmp.lt.s32.totalorder %s21, 5
      %p319 = pnand %p317, %p318
      %p320 = pneg %p319
      // Predicated region
      $region9: #{sequential_model_forward.1} parent=5 // pred_check
        _
      $region10: #{sequential_model_forward.1} parent=5 // pred_check_branch
        %322 = sbr.rel (%p319) target = $region12
      $region11: #{sequential_model_forward.1} parent=5 // pred_region
        %s323 = ssub.s32 %s21, 1
        // Predicated region
        $region13: #{sequential_model_forward.1} parent=11 // pred_check
          %p324 = pneg %p94
        $region14: #{sequential_model_forward.1} parent=11 // pred_check_branch
          %326 = sbr.rel (%p324) target = $region16
        $region15: #{sequential_model_forward.1} parent=11 // pred_region
          _
        $region16: #{sequential_model_forward.1} parent=11 // pred_fallthru
          _
        // Predicated region
        $region17: #{sequential_model_forward.1} parent=11 // pred_check
          %p327 = pneg %p115
        $region18: #{sequential_model_forward.1} parent=11 // pred_check_branch
          %329 = sbr.rel (%p327) target = $region20
        $region19: #{sequential_model_forward.1} parent=11 // pred_region
          _
        $region20: #{sequential_model_forward.1} parent=11 // pred_fallthru
          _
        // Predicated region
        $region21: #{sequential_model_forward.1} parent=11 // pred_check
          %p330 = pneg %p136
        $region22: #{sequential_model_forward.1} parent=11 // pred_check_branch
          %332 = sbr.rel (%p330) target = $region24
        $region23: #{sequential_model_forward.1} parent=11 // pred_region
          _
        $region24: #{sequential_model_forward.1} parent=11 // pred_fallthru
          _
        // Predicated region
        $region25: #{sequential_model_forward.1} parent=11 // pred_check
          %p333 = pneg %p157
        $region26: #{sequential_model_forward.1} parent=11 // pred_check_branch
          %335 = sbr.rel (%p333) target = $region28
        $region27: #{sequential_model_forward.1} parent=11 // pred_region
          _
        $region28: #{sequential_model_forward.1} parent=11 // pred_fallthru
          _
        // Predicated region
        $region29: #{sequential_model_forward.1} parent=11 // pred_check
          %p336 = pneg %p178
        $region30: #{sequential_model_forward.1} parent=11 // pred_check_branch
          %338 = sbr.rel (%p336) target = $region32
        $region31: #{sequential_model_forward.1} parent=11 // pred_region
          _
        $region32: #{sequential_model_forward.1} parent=11 // pred_fallthru
          _
        // Predicated region
        $region33: #{sequential_model_forward.1} parent=11 // pred_check
          %p339 = pneg %p199
        $region34: #{sequential_model_forward.1} parent=11 // pred_check_branch
          %341 = sbr.rel (%p339) target = $region36
        $region35: #{sequential_model_forward.1} parent=11 // pred_region
          _
        $region36: #{sequential_model_forward.1} parent=11 // pred_fallthru
          _
        // Predicated region
        $region37: #{sequential_model_forward.1} parent=11 // pred_check
          %p342 = pneg %p220
        $region38: #{sequential_model_forward.1} parent=11 // pred_check_branch
          %344 = sbr.rel (%p342) target = $region40
        $region39: #{sequential_model_forward.1} parent=11 // pred_region
          _
        $region40: #{sequential_model_forward.1} parent=11 // pred_fallthru
          _
        // Predicated region
        $region41: #{sequential_model_forward.1} parent=11 // pred_check
          %p345 = pneg %p241
        $region42: #{sequential_model_forward.1} parent=11 // pred_check_branch
          %347 = sbr.rel (%p345) target = $region44
        $region43: #{sequential_model_forward.1} parent=11 // pred_region
          _
        $region44: #{sequential_model_forward.1} parent=11 // pred_fallthru
          _
        // Predicated region
        $region45: #{sequential_model_forward.1} parent=11 // pred_check
          %p348 = pneg %p262
        $region46: #{sequential_model_forward.1} parent=11 // pred_check_branch
          %350 = sbr.rel (%p348) target = $region48
        $region47: #{sequential_model_forward.1} parent=11 // pred_region
          _
        $region48: #{sequential_model_forward.1} parent=11 // pred_fallthru
          _
        // Predicated region
        $region49: #{sequential_model_forward.1} parent=11 // pred_check
          %p351 = pneg %p283
        $region50: #{sequential_model_forward.1} parent=11 // pred_check_branch
          %353 = sbr.rel (%p351) target = $region52
        $region51: #{sequential_model_forward.1} parent=11 // pred_region
          _
        $region52: #{sequential_model_forward.1} parent=11 // pred_fallthru
          _
      $region12: #{sequential_model_forward.1} parent=5 // pred_fallthru
        _
      %p354 = scmp.lt.s32.totalorder %s21, 4
      // Predicated region
      $region53: #{sequential_model_forward.1} parent=5 // pred_check
        %p355 = pneg %p354
      $region54: #{sequential_model_forward.1} parent=5 // pred_check_branch
        %357 = sbr.rel (%p355) target = $region56
      $region55: #{sequential_model_forward.1} parent=5 // pred_region
        // Predicated region
        $region57: #{sequential_model_forward.1} parent=55 // pred_check
          %p358 = pneg %p41
        $region58: #{sequential_model_forward.1} parent=55 // pred_check_branch
          %360 = sbr.rel (%p358) target = $region60
        $region59: #{sequential_model_forward.1} parent=55 // pred_region
          %s361 = smul.u32 4, %s21
          %p362 = scmp.lt.s32.totalorder %s361, 15
          %s363 = scalar_select %p362, %s361, 15
          %s364 = scalar_lea.vmem %s0, %s363
          %s365 = smul.u32 4, %s21
        $region60: #{sequential_model_forward.1} parent=55 // pred_fallthru
          _
        // Predicated region
        $region61: #{sequential_model_forward.1} parent=55 // pred_check
          %p366 = pneg %p67
        $region62: #{sequential_model_forward.1} parent=55 // pred_check_branch
          %368 = sbr.rel (%p366) target = $region64
        $region63: #{sequential_model_forward.1} parent=55 // pred_region
          %s369 = smul.u32 4, %s21
          %p370 = scmp.lt.s32.totalorder %s369, 15
          %s371 = scalar_select %p370, %s369, 15
          %s372 = scalar_lea.vmem %s1, %s371
          %s373 = smul.u32 4, %s21
        $region64: #{sequential_model_forward.1} parent=55 // pred_fallthru
          _
      $region56: #{sequential_model_forward.1} parent=5 // pred_fallthru
        _
      %p374 = scmp.le.s32.totalorder 1, %s21
      %p375 = scmp.lt.s32.totalorder %s21, 5
      %p376 = pnand %p374, %p375
      %p377 = pneg %p376
      // Predicated region
      $region65: #{sequential_model_forward.1} parent=5 // pred_check
        _
      $region66: #{sequential_model_forward.1} parent=5 // pred_check_branch
        %379 = sbr.rel (%p376) target = $region68
      $region67: #{sequential_model_forward.1} parent=5 // pred_region
        %s380 = ssub.s32 %s21, 1
        %s381 = smul.u32 4, %s26
        %p382 = scmp.lt.s32.totalorder %s381, 15
        %s383 = scalar_select %p382, %s381, 15
        %s384 = scalar_lea.vmem %s0, %s383
        %p385 = pneg %p47
        %p386 = pneg %p44
        %s387 = smul.u32 4, %s26
        %p388 = scmp.lt.s32.totalorder %s387, 15
        %s389 = scalar_select %p388, %s387, 15
        %s390 = scalar_lea.vmem %s1, %s389
        %p391 = pneg %p73
        %p392 = pneg %p70
        %p393 = pneg %p94
        %p394 = pneg %p91
        %p395 = pneg %p115
        %p396 = pneg %p112
        %p397 = pneg %p136
        %p398 = pneg %p133
        %p399 = pneg %p157
        %p400 = pneg %p154
        %p401 = pneg %p178
        %p402 = pneg %p175
        %p403 = pneg %p199
        %p404 = pneg %p196
        %p405 = pneg %p220
        %p406 = pneg %p217
        %p407 = pneg %p241
        %p408 = pneg %p238
        %p409 = pneg %p262
        %p410 = pneg %p259
        %p411 = pneg %p283
        %p412 = pneg %p280
        %p413 = pneg %p309
        %p414 = pneg %p306
        %s415 = sand.u32 %s296, 1
        %s416 = scalar_lea.sflag [#allocation3], %s415
        %s417 = sand.u32 %s296, 1
        %s418 = smul.addr %s417, 8
        %s419 = scalar_lea.vmem [#allocation2], %s418
        %s420 = smul.u32 4, %s26
        %p421 = scmp.lt.s32.totalorder %s420, 15
        %s422 = scalar_select %p421, %s420, 15
        %s423 = scalar_lea.vmem %s0, %s422
        %s424 = smul.u32 4, %s26
        %s425 = smul.u32 4, %s26
        %p426 = scmp.lt.s32.totalorder %s425, 15
        %s427 = scalar_select %p426, %s425, 15
        %s428 = scalar_lea.vmem %s1, %s427
        %s429 = smul.u32 4, %s26
        %s430 = smul.u32 4, %s26
        %v431 = vld [vmem:[%s423] sm:$0xf]
        %v432 = vld [vmem:[%s428] sm:$0xf]
        %v433 = vld [vmem:[%s2] sm:$0xff]
        %v434 = vld [vmem:[%s2 + $0x8] sm:$0xff]
        %v435 = vld [vmem:[%s2 + $0x10] sm:$0xf]
        %437 = vset.pattern.permute.xlu0 0
        %438 = vperm.xlu0 %437, %v433
        %v439 = vpop.permute.xlu0 %438
        %442 = vset.pattern.permute.xlu0 0
        %443 = vperm.xlu0 %442, %v434
        %v444 = vpop.permute.xlu0 %443
        %447 = vset.pattern.permute.xlu0 0
        %448 = vperm.xlu0 %447, %v435
        %v449 = vpop.permute.xlu0 %448
        %v452 = vlaneseq
        %v453 = vshrl.u32 %v452, 7
        %v454 = vsub.s32 0, %v453
        %v455 = vrot.slane %v431, %v454
        %v456 = vlaneseq
        %v457 = vshrl.u32 %v456, 7
        %v458 = vsub.s32 1, %v457
        %v459 = vrot.slane %v431, %v458
        %v460 = vlaneseq
        %v461 = vshrl.u32 %v460, 7
        %v462 = vsub.s32 2, %v461
        %v463 = vrot.slane %v431, %v462
        %v464 = vlaneseq
        %v465 = vshrl.u32 %v464, 7
        %v466 = vsub.s32 3, %v465
        %v467 = vrot.slane %v431, %v466
        %v472 = vmul.f32 %v439, %v455
        %v473 = vmul.f32 %v439, %v459
        %v474 = vmul.f32 %v439, %v463
        %v475 = vmul.f32 %v439, %v467
        %v476 = vmul.f32 %v444, %v455
        %v477 = vmul.f32 %v444, %v459
        %v478 = vmul.f32 %v444, %v463
        %v479 = vmul.f32 %v444, %v467
        %v480 = vmul.f32 %v449, %v455
        %v481 = vmul.f32 %v449, %v459
        %v482 = vmul.f32 %v449, %v463
        %v483 = vmul.f32 %v449, %v467
        %484 = vset.pattern.permute.xlu0 1
        %485 = vperm.xlu0 %484, %v433
        %v486 = vpop.permute.xlu0 %485
        %488 = vset.pattern.permute.xlu0 1
        %489 = vperm.xlu0 %488, %v434
        %v490 = vpop.permute.xlu0 %489
        %492 = vset.pattern.permute.xlu0 1
        %493 = vperm.xlu0 %492, %v435
        %v494 = vpop.permute.xlu0 %493
        %v497 = vlaneseq
        %v498 = vshrl.u32 %v497, 7
        %v499 = vsub.s32 0, %v498
        %v500 = vrot.slane %v432, %v499
        %v501 = vlaneseq
        %v502 = vshrl.u32 %v501, 7
        %v503 = vsub.s32 1, %v502
        %v504 = vrot.slane %v432, %v503
        %v505 = vlaneseq
        %v506 = vshrl.u32 %v505, 7
        %v507 = vsub.s32 2, %v506
        %v508 = vrot.slane %v432, %v507
        %v509 = vlaneseq
        %v510 = vshrl.u32 %v509, 7
        %v511 = vsub.s32 3, %v510
        %v512 = vrot.slane %v432, %v511
        %v517 = vmul.f32 %v486, %v500
        %v518 = vmul.f32 %v486, %v504
        %v519 = vmul.f32 %v486, %v508
        %v520 = vmul.f32 %v486, %v512
        %v521 = vmul.f32 %v490, %v500
        %v522 = vmul.f32 %v490, %v504
        %v523 = vmul.f32 %v490, %v508
        %v524 = vmul.f32 %v490, %v512
        %v525 = vmul.f32 %v494, %v500
        %v526 = vmul.f32 %v494, %v504
        %v527 = vmul.f32 %v494, %v508
        %v528 = vmul.f32 %v494, %v512
        %v529 = vadd.f32 %v472, %v517
        %v530 = vadd.f32 %v473, %v518
        %v531 = vadd.f32 %v474, %v519
        %v532 = vadd.f32 %v475, %v520
        %v533 = vadd.f32 %v476, %v521
        %v534 = vadd.f32 %v477, %v522
        %v535 = vadd.f32 %v478, %v523
        %v536 = vadd.f32 %v479, %v524
        %v537 = vadd.f32 %v480, %v525
        %v538 = vadd.f32 %v481, %v526
        %v539 = vadd.f32 %v482, %v527
        %v540 = vadd.f32 %v483, %v528
        %v541 = vld [vmem:[%s3] sm:$0xff]
        %v542 = vld [vmem:[%s3 + $0x8] sm:$0xff]
        %v543 = vld [vmem:[%s3 + $0x10] sm:$0xf]
        %545 = vset.pattern.permute.xlu0 0
        %546 = vperm.xlu0 %545, %v541
        %v547 = vpop.permute.xlu0 %546
        %550 = vset.pattern.permute.xlu0 0
        %551 = vperm.xlu0 %550, %v542
        %v552 = vpop.permute.xlu0 %551
        %555 = vset.pattern.permute.xlu0 0
        %556 = vperm.xlu0 %555, %v543
        %v557 = vpop.permute.xlu0 %556
        %v559 = vadd.f32 %v529, %v547
        %v560 = vadd.f32 %v530, %v547
        %v561 = vadd.f32 %v531, %v547
        %v562 = vadd.f32 %v532, %v547
        %v563 = vadd.f32 %v533, %v552
        %v564 = vadd.f32 %v534, %v552
        %v565 = vadd.f32 %v535, %v552
        %v566 = vadd.f32 %v536, %v552
        %v567 = vadd.f32 %v537, %v557
        %v568 = vadd.f32 %v538, %v557
        %v569 = vadd.f32 %v539, %v557
        %v570 = vadd.f32 %v540, %v557
        %v571 = vtanh.pop %v559
        %v572 = vtanh.pop %v560
        %v573 = vtanh.pop %v561
        %v574 = vtanh.pop %v562
        %v575 = vtanh.pop %v563
        %v576 = vtanh.pop %v564
        %v577 = vtanh.pop %v565
        %v578 = vtanh.pop %v566
        %v579 = vtanh.pop %v567
        %v580 = vtanh.pop %v568
        %v581 = vtanh.pop %v569
        %v582 = vtanh.pop %v570
        %v583 = vld [vmem:[%s4] sm:$0xff]
        %v584 = vld [vmem:[%s4 + $0x8] sm:$0xff]
        %v585 = vld [vmem:[%s4 + $0x10] sm:$0xf]
        %v586 = vld [vmem:[%s5] sm:$0xff]
        %v587 = vld [vmem:[%s5 + $0x8] sm:$0xff]
        %v588 = vld [vmem:[%s5 + $0x10] sm:$0xf]
        %590 = vset.pattern.permute.xlu0 0
        %591 = vperm.xlu0 %590, %v586
        %v592 = vpop.permute.xlu0 %591
        %595 = vset.pattern.permute.xlu0 0
        %596 = vperm.xlu0 %595, %v587
        %v597 = vpop.permute.xlu0 %596
        %600 = vset.pattern.permute.xlu0 0
        %601 = vperm.xlu0 %600, %v588
        %v602 = vpop.permute.xlu0 %601
        %vm604 = vcmask 162816
        %v606 = vsel %vm604, %v583, 0
        %v609 = vsel %vm604, %v584, 0
        %v612 = vsel %vm604, %v585, 0
        %vm614 = vcmask 1043456
        %v616 = vsel %vm614, %v579, 0
        %v619 = vsel %vm614, %v580, 0
        %v622 = vsel %vm614, %v581, 0
        %v625 = vsel %vm614, %v582, 0
        %627 = vmatprep.subr.mxu0 %v572
        %628 = vmatpush1.msra.mxu0 %v571
        %629 = vmatprep.subr.mxu0 %v576
        %630 = vmatpush1.msra.mxu0 %v575
        %631 = vmatprep.subr.mxu0 %v619
        %632 = vmatpush1.msra.mxu0 %v616
        %633 = vmatprep.subr.mxu0 0.0
        %634 = vmatpush1.msra.mxu0 0.0
        %635 = vmatprep.subr.mxu0 0.0
        %636 = vmatpush1.msra.mxu0 0.0
        %637 = vmatprep.subr.mxu0 0.0
        %638 = vmatpush1.msra.mxu0 0.0
        %639 = vmatprep.subr.mxu0 0.0
        %640 = vmatpush1.msra.mxu0 0.0
        %641 = vmatprep.subr.mxu0 0.0
        %642 = vmatpush1.msra.mxu0 0.0
        %643 = vmatprep.subr.mxu0 0.0
        %644 = vmatpush1.msra.mxu0 0.0
        %645 = vmatprep.subr.mxu0 0.0
        %646 = vmatpush1.msra.mxu0 0.0
        %647 = vmatprep.subr.mxu0 0.0
        %648 = vmatpush1.msra.mxu0 0.0
        %649 = vmatprep.subr.mxu0 0.0
        %650 = vmatpush1.msra.mxu0 0.0
        %651 = vmatprep.subr.mxu0 0.0
        %652 = vmatpush1.msra.mxu0 0.0
        %653 = vmatprep.subr.mxu0 0.0
        %654 = vmatpush1.msra.mxu0 0.0
        %655 = vmatprep.subr.mxu0 0.0
        %656 = vmatpush1.msra.mxu0 0.0
        %657 = vmatprep.subr.mxu0 0.0
        %658 = vmatpush1.msra.mxu0 0.0
        %659 = vmatprep.subr.mxu0 0.0
        %660 = vmatpush1.msra.mxu0 0.0
        %661 = vmatprep.subr.mxu0 0.0
        %662 = vmatpush1.msra.mxu0 0.0
        %663 = vmatprep.subr.mxu0 0.0
        %664 = vmatpush1.msra.mxu0 0.0
        %665 = vmatprep.subr.mxu0 0.0
        %666 = vmatpush1.msra.mxu0 0.0
        %667 = vmatprep.subr.mxu0 0.0
        %668 = vmatpush1.msra.mxu0 0.0
        %669 = vmatprep.subr.mxu0 0.0
        %670 = vmatpush1.msra.mxu0 0.0
        %671 = vmatprep.subr.mxu0 0.0
        %672 = vmatpush1.msra.mxu0 0.0
        %673 = vmatprep.subr.mxu0 0.0
        %674 = vmatpush1.msra.mxu0 0.0
        %675 = vmatprep.subr.mxu0 0.0
        %676 = vmatpush1.msra.mxu0 0.0
        %677 = vmatprep.subr.mxu0 0.0
        %678 = vmatpush1.msra.mxu0 0.0
        %679 = vmatprep.subr.mxu0 0.0
        %680 = vmatpush1.msra.mxu0 0.0
        %681 = vmatprep.subr.mxu0 0.0
        %682 = vmatpush1.msra.mxu0 0.0
        %683 = vmatprep.subr.mxu0 0.0
        %684 = vmatpush1.msra.mxu0 0.0
        %685 = vmatprep.subr.mxu0 0.0
        %686 = vmatpush1.msra.mxu0 0.0
        %687 = vmatprep.subr.mxu0 0.0
        %688 = vmatpush1.msra.mxu0 0.0
        %689 = vmatprep.subr.mxu0 0.0
        %690 = vmatpush1.msra.mxu0 0.0
        %691 = vmatprep.mubr.f32.mxu0 0.0
        %692 = vmatmul.mubr.f32.gmra.mrb[0].mxu0 %v606
        %v693 = vpop.f32.mrb[0].mxu0
        %v694 = vadd.f32 %v592, %v693
        %v695 = vpop.f32.mrb[0].mxu0
        %v696 = vadd.f32 %v592, %v695
        %697 = vmatprep.mubr.f32.mxu0 0.0
        %698 = vmatmul.mubr.f32.gmra.mrb[0].mxu0 %v609
        %v699 = vpop.f32.mrb[0].mxu0
        %v700 = vadd.f32 %v597, %v699
        %v701 = vpop.f32.mrb[0].mxu0
        %v702 = vadd.f32 %v597, %v701
        %703 = vmatprep.mubr.f32.mxu0 0.0
        %704 = vmatmul.mubr.f32.gmra.mrb[0].mxu0 %v612
        %v705 = vpop.f32.mrb[0].mxu0
        %v706 = vadd.f32 %v602, %v705
        %v707 = vpop.f32.mrb[0].mxu0
        %v708 = vadd.f32 %v602, %v707
        %709 = vdwg.mxu0
        %710 = vmatprep.subr.mxu0 %v574
        %711 = vmatpush1.msra.mxu0 %v573
        %712 = vmatprep.subr.mxu0 %v578
        %713 = vmatpush1.msra.mxu0 %v577
        %714 = vmatprep.subr.mxu0 %v625
        %715 = vmatpush1.msra.mxu0 %v622
        %716 = vmatprep.subr.mxu0 0.0
        %717 = vmatpush1.msra.mxu0 0.0
        %718 = vmatprep.subr.mxu0 0.0
        %719 = vmatpush1.msra.mxu0 0.0
        %720 = vmatprep.subr.mxu0 0.0
        %721 = vmatpush1.msra.mxu0 0.0
        %722 = vmatprep.subr.mxu0 0.0
        %723 = vmatpush1.msra.mxu0 0.0
        %724 = vmatprep.subr.mxu0 0.0
        %725 = vmatpush1.msra.mxu0 0.0
        %726 = vmatprep.subr.mxu0 0.0
        %727 = vmatpush1.msra.mxu0 0.0
        %728 = vmatprep.subr.mxu0 0.0
        %729 = vmatpush1.msra.mxu0 0.0
        %730 = vmatprep.subr.mxu0 0.0
        %731 = vmatpush1.msra.mxu0 0.0
        %732 = vmatprep.subr.mxu0 0.0
        %733 = vmatpush1.msra.mxu0 0.0
        %734 = vmatprep.subr.mxu0 0.0
        %735 = vmatpush1.msra.mxu0 0.0
        %736 = vmatprep.subr.mxu0 0.0
        %737 = vmatpush1.msra.mxu0 0.0
        %738 = vmatprep.subr.mxu0 0.0
        %739 = vmatpush1.msra.mxu0 0.0
        %740 = vmatprep.subr.mxu0 0.0
        %741 = vmatpush1.msra.mxu0 0.0
        %742 = vmatprep.subr.mxu0 0.0
        %743 = vmatpush1.msra.mxu0 0.0
        %744 = vmatprep.subr.mxu0 0.0
        %745 = vmatpush1.msra.mxu0 0.0
        %746 = vmatprep.subr.mxu0 0.0
        %747 = vmatpush1.msra.mxu0 0.0
        %748 = vmatprep.subr.mxu0 0.0
        %749 = vmatpush1.msra.mxu0 0.0
        %750 = vmatprep.subr.mxu0 0.0
        %751 = vmatpush1.msra.mxu0 0.0
        %752 = vmatprep.subr.mxu0 0.0
        %753 = vmatpush1.msra.mxu0 0.0
        %754 = vmatprep.subr.mxu0 0.0
        %755 = vmatpush1.msra.mxu0 0.0
        %756 = vmatprep.subr.mxu0 0.0
        %757 = vmatpush1.msra.mxu0 0.0
        %758 = vmatprep.subr.mxu0 0.0
        %759 = vmatpush1.msra.mxu0 0.0
        %760 = vmatprep.subr.mxu0 0.0
        %761 = vmatpush1.msra.mxu0 0.0
        %762 = vmatprep.subr.mxu0 0.0
        %763 = vmatpush1.msra.mxu0 0.0
        %764 = vmatprep.subr.mxu0 0.0
        %765 = vmatpush1.msra.mxu0 0.0
        %766 = vmatprep.subr.mxu0 0.0
        %767 = vmatpush1.msra.mxu0 0.0
        %768 = vmatprep.subr.mxu0 0.0
        %769 = vmatpush1.msra.mxu0 0.0
        %770 = vmatprep.subr.mxu0 0.0
        %771 = vmatpush1.msra.mxu0 0.0
        %772 = vmatprep.subr.mxu0 0.0
        %773 = vmatpush1.msra.mxu0 0.0
        %774 = vmatprep.mubr.f32.mxu0 0.0
        %775 = vmatmul.mubr.f32.gmra.mrb[0].mxu0 %v606
        %v776 = vpop.f32.mrb[0].mxu0
        %v777 = vadd.f32 %v592, %v776
        %v778 = vpop.f32.mrb[0].mxu0
        %v779 = vadd.f32 %v592, %v778
        %780 = vmatprep.mubr.f32.mxu0 0.0
        %781 = vmatmul.mubr.f32.gmra.mrb[0].mxu0 %v609
        %v782 = vpop.f32.mrb[0].mxu0
        %v783 = vadd.f32 %v597, %v782
        %v784 = vpop.f32.mrb[0].mxu0
        %v785 = vadd.f32 %v597, %v784
        %786 = vmatprep.mubr.f32.mxu0 0.0
        %787 = vmatmul.mubr.f32.gmra.mrb[0].mxu0 %v612
        %v788 = vpop.f32.mrb[0].mxu0
        %v789 = vadd.f32 %v602, %v788
        %v790 = vpop.f32.mrb[0].mxu0
        %v791 = vadd.f32 %v602, %v790
        %792 = vdwg.mxu0
        %v793 = vtanh.pop %v694
        %v794 = vtanh.pop %v696
        %v795 = vtanh.pop %v777
        %v796 = vtanh.pop %v779
        %v797 = vtanh.pop %v700
        %v798 = vtanh.pop %v702
        %v799 = vtanh.pop %v783
        %v800 = vtanh.pop %v785
        %v801 = vtanh.pop %v706
        %v802 = vtanh.pop %v708
        %v803 = vtanh.pop %v789
        %v804 = vtanh.pop %v791
        %v805 = vld [vmem:[%s6] sm:$0xff]
        %v806 = vld [vmem:[%s6 + $0x8] sm:$0xff]
        %v807 = vld [vmem:[%s6 + $0x10] sm:$0xf]
        %v808 = vld [vmem:[%s7] sm:$0xff]
        %v809 = vld [vmem:[%s7 + $0x8] sm:$0xff]
        %v810 = vld [vmem:[%s7 + $0x10] sm:$0xf]
        %812 = vset.pattern.permute.xlu0 0
        %813 = vperm.xlu0 %812, %v808
        %v814 = vpop.permute.xlu0 %813
        %817 = vset.pattern.permute.xlu0 0
        %818 = vperm.xlu0 %817, %v809
        %v819 = vpop.permute.xlu0 %818
        %822 = vset.pattern.permute.xlu0 0
        %823 = vperm.xlu0 %822, %v810
        %v824 = vpop.permute.xlu0 %823
        %v827 = vsel %vm604, %v805, 0
        %v830 = vsel %vm604, %v806, 0
        %v833 = vsel %vm604, %v807, 0
        %v836 = vsel %vm614, %v801, 0
        %v839 = vsel %vm614, %v802, 0
        %v842 = vsel %vm614, %v803, 0
        %v845 = vsel %vm614, %v804, 0
        %847 = vmatprep.subr.mxu0 %v794
        %848 = vmatpush1.msra.mxu0 %v793
        %849 = vmatprep.subr.mxu0 %v798
        %850 = vmatpush1.msra.mxu0 %v797
        %851 = vmatprep.subr.mxu0 %v839
        %852 = vmatpush1.msra.mxu0 %v836
        %853 = vmatprep.subr.mxu0 0.0
        %854 = vmatpush1.msra.mxu0 0.0
        %855 = vmatprep.subr.mxu0 0.0
        %856 = vmatpush1.msra.mxu0 0.0
        %857 = vmatprep.subr.mxu0 0.0
        %858 = vmatpush1.msra.mxu0 0.0
        %859 = vmatprep.subr.mxu0 0.0
        %860 = vmatpush1.msra.mxu0 0.0
        %861 = vmatprep.subr.mxu0 0.0
        %862 = vmatpush1.msra.mxu0 0.0
        %863 = vmatprep.subr.mxu0 0.0
        %864 = vmatpush1.msra.mxu0 0.0
        %865 = vmatprep.subr.mxu0 0.0
        %866 = vmatpush1.msra.mxu0 0.0
        %867 = vmatprep.subr.mxu0 0.0
        %868 = vmatpush1.msra.mxu0 0.0
        %869 = vmatprep.subr.mxu0 0.0
        %870 = vmatpush1.msra.mxu0 0.0
        %871 = vmatprep.subr.mxu0 0.0
        %872 = vmatpush1.msra.mxu0 0.0
        %873 = vmatprep.subr.mxu0 0.0
        %874 = vmatpush1.msra.mxu0 0.0
        %875 = vmatprep.subr.mxu0 0.0
        %876 = vmatpush1.msra.mxu0 0.0
        %877 = vmatprep.subr.mxu0 0.0
        %878 = vmatpush1.msra.mxu0 0.0
        %879 = vmatprep.subr.mxu0 0.0
        %880 = vmatpush1.msra.mxu0 0.0
        %881 = vmatprep.subr.mxu0 0.0
        %882 = vmatpush1.msra.mxu0 0.0
        %883 = vmatprep.subr.mxu0 0.0
        %884 = vmatpush1.msra.mxu0 0.0
        %885 = vmatprep.subr.mxu0 0.0
        %886 = vmatpush1.msra.mxu0 0.0
        %887 = vmatprep.subr.mxu0 0.0
        %888 = vmatpush1.msra.mxu0 0.0
        %889 = vmatprep.subr.mxu0 0.0
        %890 = vmatpush1.msra.mxu0 0.0
        %891 = vmatprep.subr.mxu0 0.0
        %892 = vmatpush1.msra.mxu0 0.0
        %893 = vmatprep.subr.mxu0 0.0
        %894 = vmatpush1.msra.mxu0 0.0
        %895 = vmatprep.subr.mxu0 0.0
        %896 = vmatpush1.msra.mxu0 0.0
        %897 = vmatprep.subr.mxu0 0.0
        %898 = vmatpush1.msra.mxu0 0.0
        %899 = vmatprep.subr.mxu0 0.0
        %900 = vmatpush1.msra.mxu0 0.0
        %901 = vmatprep.subr.mxu0 0.0
        %902 = vmatpush1.msra.mxu0 0.0
        %903 = vmatprep.subr.mxu0 0.0
        %904 = vmatpush1.msra.mxu0 0.0
        %905 = vmatprep.subr.mxu0 0.0
        %906 = vmatpush1.msra.mxu0 0.0
        %907 = vmatprep.subr.mxu0 0.0
        %908 = vmatpush1.msra.mxu0 0.0
        %909 = vmatprep.subr.mxu0 0.0
        %910 = vmatpush1.msra.mxu0 0.0
        %911 = vmatprep.mubr.f32.mxu0 0.0
        %912 = vmatmul.mubr.f32.gmra.mrb[0].mxu0 %v827
        %v913 = vpop.f32.mrb[0].mxu0
        %v914 = vadd.f32 %v814, %v913
        %v915 = vpop.f32.mrb[0].mxu0
        %v916 = vadd.f32 %v814, %v915
        %917 = vmatprep.mubr.f32.mxu0 0.0
        %918 = vmatmul.mubr.f32.gmra.mrb[0].mxu0 %v830
        %v919 = vpop.f32.mrb[0].mxu0
        %v920 = vadd.f32 %v819, %v919
        %v921 = vpop.f32.mrb[0].mxu0
        %v922 = vadd.f32 %v819, %v921
        %923 = vmatprep.mubr.f32.mxu0 0.0
        %924 = vmatmul.mubr.f32.gmra.mrb[0].mxu0 %v833
        %v925 = vpop.f32.mrb[0].mxu0
        %v926 = vadd.f32 %v824, %v925
        %v927 = vpop.f32.mrb[0].mxu0
        %v928 = vadd.f32 %v824, %v927
        %929 = vdwg.mxu0
        %930 = vmatprep.subr.mxu0 %v796
        %931 = vmatpush1.msra.mxu0 %v795
        %932 = vmatprep.subr.mxu0 %v800
        %933 = vmatpush1.msra.mxu0 %v799
        %934 = vmatprep.subr.mxu0 %v845
        %935 = vmatpush1.msra.mxu0 %v842
        %936 = vmatprep.subr.mxu0 0.0
        %937 = vmatpush1.msra.mxu0 0.0
        %938 = vmatprep.subr.mxu0 0.0
        %939 = vmatpush1.msra.mxu0 0.0
        %940 = vmatprep.subr.mxu0 0.0
        %941 = vmatpush1.msra.mxu0 0.0
        %942 = vmatprep.subr.mxu0 0.0
        %943 = vmatpush1.msra.mxu0 0.0
        %944 = vmatprep.subr.mxu0 0.0
        %945 = vmatpush1.msra.mxu0 0.0
        %946 = vmatprep.subr.mxu0 0.0
        %947 = vmatpush1.msra.mxu0 0.0
        %948 = vmatprep.subr.mxu0 0.0
        %949 = vmatpush1.msra.mxu0 0.0
        %950 = vmatprep.subr.mxu0 0.0
        %951 = vmatpush1.msra.mxu0 0.0
        %952 = vmatprep.subr.mxu0 0.0
        %953 = vmatpush1.msra.mxu0 0.0
        %954 = vmatprep.subr.mxu0 0.0
        %955 = vmatpush1.msra.mxu0 0.0
        %956 = vmatprep.subr.mxu0 0.0
        %957 = vmatpush1.msra.mxu0 0.0
        %958 = vmatprep.subr.mxu0 0.0
        %959 = vmatpush1.msra.mxu0 0.0
        %960 = vmatprep.subr.mxu0 0.0
        %961 = vmatpush1.msra.mxu0 0.0
        %962 = vmatprep.subr.mxu0 0.0
        %963 = vmatpush1.msra.mxu0 0.0
        %964 = vmatprep.subr.mxu0 0.0
        %965 = vmatpush1.msra.mxu0 0.0
        %966 = vmatprep.subr.mxu0 0.0
        %967 = vmatpush1.msra.mxu0 0.0
        %968 = vmatprep.subr.mxu0 0.0
        %969 = vmatpush1.msra.mxu0 0.0
        %970 = vmatprep.subr.mxu0 0.0
        %971 = vmatpush1.msra.mxu0 0.0
        %972 = vmatprep.subr.mxu0 0.0
        %973 = vmatpush1.msra.mxu0 0.0
        %974 = vmatprep.subr.mxu0 0.0
        %975 = vmatpush1.msra.mxu0 0.0
        %976 = vmatprep.subr.mxu0 0.0
        %977 = vmatpush1.msra.mxu0 0.0
        %978 = vmatprep.subr.mxu0 0.0
        %979 = vmatpush1.msra.mxu0 0.0
        %980 = vmatprep.subr.mxu0 0.0
        %981 = vmatpush1.msra.mxu0 0.0
        %982 = vmatprep.subr.mxu0 0.0
        %983 = vmatpush1.msra.mxu0 0.0
        %984 = vmatprep.subr.mxu0 0.0
        %985 = vmatpush1.msra.mxu0 0.0
        %986 = vmatprep.subr.mxu0 0.0
        %987 = vmatpush1.msra.mxu0 0.0
        %988 = vmatprep.subr.mxu0 0.0
        %989 = vmatpush1.msra.mxu0 0.0
        %990 = vmatprep.subr.mxu0 0.0
        %991 = vmatpush1.msra.mxu0 0.0
        %992 = vmatprep.subr.mxu0 0.0
        %993 = vmatpush1.msra.mxu0 0.0
        %994 = vmatprep.mubr.f32.mxu0 0.0
        %995 = vmatmul.mubr.f32.gmra.mrb[0].mxu0 %v827
        %v996 = vpop.f32.mrb[0].mxu0
        %v997 = vadd.f32 %v814, %v996
        %v998 = vpop.f32.mrb[0].mxu0
        %v999 = vadd.f32 %v814, %v998
        %1000 = vmatprep.mubr.f32.mxu0 0.0
        %1001 = vmatmul.mubr.f32.gmra.mrb[0].mxu0 %v830
        %v1002 = vpop.f32.mrb[0].mxu0
        %v1003 = vadd.f32 %v819, %v1002
        %v1004 = vpop.f32.mrb[0].mxu0
        %v1005 = vadd.f32 %v819, %v1004
        %1006 = vmatprep.mubr.f32.mxu0 0.0
        %1007 = vmatmul.mubr.f32.gmra.mrb[0].mxu0 %v833
        %v1008 = vpop.f32.mrb[0].mxu0
        %v1009 = vadd.f32 %v824, %v1008
        %v1010 = vpop.f32.mrb[0].mxu0
        %v1011 = vadd.f32 %v824, %v1010
        %1012 = vdwg.mxu0
        %v1013 = vtanh.pop %v914
        %v1014 = vtanh.pop %v916
        %v1015 = vtanh.pop %v997
        %v1016 = vtanh.pop %v999
        %v1017 = vtanh.pop %v920
        %v1018 = vtanh.pop %v922
        %v1019 = vtanh.pop %v1003
        %v1020 = vtanh.pop %v1005
        %v1021 = vtanh.pop %v926
        %v1022 = vtanh.pop %v928
        %v1023 = vtanh.pop %v1009
        %v1024 = vtanh.pop %v1011
        %v1025 = vld [vmem:[%s8] sm:$0xff]
        %v1026 = vld [vmem:[%s8 + $0x8] sm:$0xff]
        %v1027 = vld [vmem:[%s8 + $0x10] sm:$0xf]
        %v1028 = vld [vmem:[%s9] sm:$0xff]
        %v1029 = vld [vmem:[%s9 + $0x8] sm:$0xff]
        %v1030 = vld [vmem:[%s9 + $0x10] sm:$0xf]
        %1032 = vset.pattern.permute.xlu0 0
        %1033 = vperm.xlu0 %1032, %v1028
        %v1034 = vpop.permute.xlu0 %1033
        %1037 = vset.pattern.permute.xlu0 0
        %1038 = vperm.xlu0 %1037, %v1029
        %v1039 = vpop.permute.xlu0 %1038
        %1042 = vset.pattern.permute.xlu0 0
        %1043 = vperm.xlu0 %1042, %v1030
        %v1044 = vpop.permute.xlu0 %1043
        %v1047 = vsel %vm604, %v1025, 0
        %v1050 = vsel %vm604, %v1026, 0
        %v1053 = vsel %vm604, %v1027, 0
        %v1056 = vsel %vm614, %v1021, 0
        %v1059 = vsel %vm614, %v1022, 0
        %v1062 = vsel %vm614, %v1023, 0
        %v1065 = vsel %vm614, %v1024, 0
        %1067 = vmatprep.subr.mxu0 %v1014
        %1068 = vmatpush1.msra.mxu0 %v1013
        %1069 = vmatprep.subr.mxu0 %v1018
        %1070 = vmatpush1.msra.mxu0 %v1017
        %1071 = vmatprep.subr.mxu0 %v1059
        %1072 = vmatpush1.msra.mxu0 %v1056
        %1073 = vmatprep.subr.mxu0 0.0
        %1074 = vmatpush1.msra.mxu0 0.0
        %1075 = vmatprep.subr.mxu0 0.0
        %1076 = vmatpush1.msra.mxu0 0.0
        %1077 = vmatprep.subr.mxu0 0.0
        %1078 = vmatpush1.msra.mxu0 0.0
        %1079 = vmatprep.subr.mxu0 0.0
        %1080 = vmatpush1.msra.mxu0 0.0
        %1081 = vmatprep.subr.mxu0 0.0
        %1082 = vmatpush1.msra.mxu0 0.0
        %1083 = vmatprep.subr.mxu0 0.0
        %1084 = vmatpush1.msra.mxu0 0.0
        %1085 = vmatprep.subr.mxu0 0.0
        %1086 = vmatpush1.msra.mxu0 0.0
        %1087 = vmatprep.subr.mxu0 0.0
        %1088 = vmatpush1.msra.mxu0 0.0
        %1089 = vmatprep.subr.mxu0 0.0
        %1090 = vmatpush1.msra.mxu0 0.0
        %1091 = vmatprep.subr.mxu0 0.0
        %1092 = vmatpush1.msra.mxu0 0.0
        %1093 = vmatprep.subr.mxu0 0.0
        %1094 = vmatpush1.msra.mxu0 0.0
        %1095 = vmatprep.subr.mxu0 0.0
        %1096 = vmatpush1.msra.mxu0 0.0
        %1097 = vmatprep.subr.mxu0 0.0
        %1098 = vmatpush1.msra.mxu0 0.0
        %1099 = vmatprep.subr.mxu0 0.0
        %1100 = vmatpush1.msra.mxu0 0.0
        %1101 = vmatprep.subr.mxu0 0.0
        %1102 = vmatpush1.msra.mxu0 0.0
        %1103 = vmatprep.subr.mxu0 0.0
        %1104 = vmatpush1.msra.mxu0 0.0
        %1105 = vmatprep.subr.mxu0 0.0
        %1106 = vmatpush1.msra.mxu0 0.0
        %1107 = vmatprep.subr.mxu0 0.0
        %1108 = vmatpush1.msra.mxu0 0.0
        %1109 = vmatprep.subr.mxu0 0.0
        %1110 = vmatpush1.msra.mxu0 0.0
        %1111 = vmatprep.subr.mxu0 0.0
        %1112 = vmatpush1.msra.mxu0 0.0
        %1113 = vmatprep.subr.mxu0 0.0
        %1114 = vmatpush1.msra.mxu0 0.0
        %1115 = vmatprep.subr.mxu0 0.0
        %1116 = vmatpush1.msra.mxu0 0.0
        %1117 = vmatprep.subr.mxu0 0.0
        %1118 = vmatpush1.msra.mxu0 0.0
        %1119 = vmatprep.subr.mxu0 0.0
        %1120 = vmatpush1.msra.mxu0 0.0
        %1121 = vmatprep.subr.mxu0 0.0
        %1122 = vmatpush1.msra.mxu0 0.0
        %1123 = vmatprep.subr.mxu0 0.0
        %1124 = vmatpush1.msra.mxu0 0.0
        %1125 = vmatprep.subr.mxu0 0.0
        %1126 = vmatpush1.msra.mxu0 0.0
        %1127 = vmatprep.subr.mxu0 0.0
        %1128 = vmatpush1.msra.mxu0 0.0
        %1129 = vmatprep.subr.mxu0 0.0
        %1130 = vmatpush1.msra.mxu0 0.0
        %1131 = vmatprep.mubr.f32.mxu0 0.0
        %1132 = vmatmul.mubr.f32.gmra.mrb[0].mxu0 %v1047
        %v1133 = vpop.f32.mrb[0].mxu0
        %v1134 = vadd.f32 %v1034, %v1133
        %v1135 = vpop.f32.mrb[0].mxu0
        %v1136 = vadd.f32 %v1034, %v1135
        %1137 = vmatprep.mubr.f32.mxu0 0.0
        %1138 = vmatmul.mubr.f32.gmra.mrb[0].mxu0 %v1050
        %v1139 = vpop.f32.mrb[0].mxu0
        %v1140 = vadd.f32 %v1039, %v1139
        %v1141 = vpop.f32.mrb[0].mxu0
        %v1142 = vadd.f32 %v1039, %v1141
        %1143 = vmatprep.mubr.f32.mxu0 0.0
        %1144 = vmatmul.mubr.f32.gmra.mrb[0].mxu0 %v1053
        %v1145 = vpop.f32.mrb[0].mxu0
        %v1146 = vadd.f32 %v1044, %v1145
        %v1147 = vpop.f32.mrb[0].mxu0
        %v1148 = vadd.f32 %v1044, %v1147
        %1149 = vdwg.mxu0
        %1150 = vmatprep.subr.mxu0 %v1016
        %1151 = vmatpush1.msra.mxu0 %v1015
        %1152 = vmatprep.subr.mxu0 %v1020
        %1153 = vmatpush1.msra.mxu0 %v1019
        %1154 = vmatprep.subr.mxu0 %v1065
        %1155 = vmatpush1.msra.mxu0 %v1062
        %1156 = vmatprep.subr.mxu0 0.0
        %1157 = vmatpush1.msra.mxu0 0.0
        %1158 = vmatprep.subr.mxu0 0.0
        %1159 = vmatpush1.msra.mxu0 0.0
        %1160 = vmatprep.subr.mxu0 0.0
        %1161 = vmatpush1.msra.mxu0 0.0
        %1162 = vmatprep.subr.mxu0 0.0
        %1163 = vmatpush1.msra.mxu0 0.0
        %1164 = vmatprep.subr.mxu0 0.0
        %1165 = vmatpush1.msra.mxu0 0.0
        %1166 = vmatprep.subr.mxu0 0.0
        %1167 = vmatpush1.msra.mxu0 0.0
        %1168 = vmatprep.subr.mxu0 0.0
        %1169 = vmatpush1.msra.mxu0 0.0
        %1170 = vmatprep.subr.mxu0 0.0
        %1171 = vmatpush1.msra.mxu0 0.0
        %1172 = vmatprep.subr.mxu0 0.0
        %1173 = vmatpush1.msra.mxu0 0.0
        %1174 = vmatprep.subr.mxu0 0.0
        %1175 = vmatpush1.msra.mxu0 0.0
        %1176 = vmatprep.subr.mxu0 0.0
        %1177 = vmatpush1.msra.mxu0 0.0
        %1178 = vmatprep.subr.mxu0 0.0
        %1179 = vmatpush1.msra.mxu0 0.0
        %1180 = vmatprep.subr.mxu0 0.0
        %1181 = vmatpush1.msra.mxu0 0.0
        %1182 = vmatprep.subr.mxu0 0.0
        %1183 = vmatpush1.msra.mxu0 0.0
        %1184 = vmatprep.subr.mxu0 0.0
        %1185 = vmatpush1.msra.mxu0 0.0
        %1186 = vmatprep.subr.mxu0 0.0
        %1187 = vmatpush1.msra.mxu0 0.0
        %1188 = vmatprep.subr.mxu0 0.0
        %1189 = vmatpush1.msra.mxu0 0.0
        %1190 = vmatprep.subr.mxu0 0.0
        %1191 = vmatpush1.msra.mxu0 0.0
        %1192 = vmatprep.subr.mxu0 0.0
        %1193 = vmatpush1.msra.mxu0 0.0
        %1194 = vmatprep.subr.mxu0 0.0
        %1195 = vmatpush1.msra.mxu0 0.0
        %1196 = vmatprep.subr.mxu0 0.0
        %1197 = vmatpush1.msra.mxu0 0.0
        %1198 = vmatprep.subr.mxu0 0.0
        %1199 = vmatpush1.msra.mxu0 0.0
        %1200 = vmatprep.subr.mxu0 0.0
        %1201 = vmatpush1.msra.mxu0 0.0
        %1202 = vmatprep.subr.mxu0 0.0
        %1203 = vmatpush1.msra.mxu0 0.0
        %1204 = vmatprep.subr.mxu0 0.0
        %1205 = vmatpush1.msra.mxu0 0.0
        %1206 = vmatprep.subr.mxu0 0.0
        %1207 = vmatpush1.msra.mxu0 0.0
        %1208 = vmatprep.subr.mxu0 0.0
        %1209 = vmatpush1.msra.mxu0 0.0
        %1210 = vmatprep.subr.mxu0 0.0
        %1211 = vmatpush1.msra.mxu0 0.0
        %1212 = vmatprep.subr.mxu0 0.0
        %1213 = vmatpush1.msra.mxu0 0.0
        %1214 = vmatprep.mubr.f32.mxu0 0.0
        %1215 = vmatmul.mubr.f32.gmra.mrb[0].mxu0 %v1047
        %v1216 = vpop.f32.mrb[0].mxu0
        %v1217 = vadd.f32 %v1034, %v1216
        %v1218 = vpop.f32.mrb[0].mxu0
        %v1219 = vadd.f32 %v1034, %v1218
        %1220 = vmatprep.mubr.f32.mxu0 0.0
        %1221 = vmatmul.mubr.f32.gmra.mrb[0].mxu0 %v1050
        %v1222 = vpop.f32.mrb[0].mxu0
        %v1223 = vadd.f32 %v1039, %v1222
        %v1224 = vpop.f32.mrb[0].mxu0
        %v1225 = vadd.f32 %v1039, %v1224
        %1226 = vmatprep.mubr.f32.mxu0 0.0
        %1227 = vmatmul.mubr.f32.gmra.mrb[0].mxu0 %v1053
        %v1228 = vpop.f32.mrb[0].mxu0
        %v1229 = vadd.f32 %v1044, %v1228
        %v1230 = vpop.f32.mrb[0].mxu0
        %v1231 = vadd.f32 %v1044, %v1230
        %1232 = vdwg.mxu0
        %v1233 = vtanh.pop %v1134
        %v1234 = vtanh.pop %v1136
        %v1235 = vtanh.pop %v1217
        %v1236 = vtanh.pop %v1219
        %v1237 = vtanh.pop %v1140
        %v1238 = vtanh.pop %v1142
        %v1239 = vtanh.pop %v1223
        %v1240 = vtanh.pop %v1225
        %v1241 = vtanh.pop %v1146
        %v1242 = vtanh.pop %v1148
        %v1243 = vtanh.pop %v1229
        %v1244 = vtanh.pop %v1231
        %v1245 = vld [vmem:[%s10] sm:$0x3]
        %v1246 = vld [vmem:[%s11] sm:$0x3]
        %1248 = vset.pattern.permute.xlu0 0
        %1249 = vperm.xlu0 %1248, %v1246
        %v1250 = vpop.permute.xlu0 %1249
        %v1253 = vsel %vm604, %v1245, 0
        %v1256 = vsel %vm614, %v1241, 0
        %v1259 = vsel %vm614, %v1242, 0
        %v1262 = vsel %vm614, %v1243, 0
        %v1265 = vsel %vm614, %v1244, 0
        %1267 = vmatprep.subr.mxu0 %v1234
        %1268 = vmatpush1.msra.mxu0 %v1233
        %1269 = vmatprep.subr.mxu0 %v1238
        %1270 = vmatpush1.msra.mxu0 %v1237
        %1271 = vmatprep.subr.mxu0 %v1259
        %1272 = vmatpush1.msra.mxu0 %v1256
        %1273 = vmatprep.subr.mxu0 0.0
        %1274 = vmatpush1.msra.mxu0 0.0
        %1275 = vmatprep.subr.mxu0 0.0
        %1276 = vmatpush1.msra.mxu0 0.0
        %1277 = vmatprep.subr.mxu0 0.0
        %1278 = vmatpush1.msra.mxu0 0.0
        %1279 = vmatprep.subr.mxu0 0.0
        %1280 = vmatpush1.msra.mxu0 0.0
        %1281 = vmatprep.subr.mxu0 0.0
        %1282 = vmatpush1.msra.mxu0 0.0
        %1283 = vmatprep.subr.mxu0 0.0
        %1284 = vmatpush1.msra.mxu0 0.0
        %1285 = vmatprep.subr.mxu0 0.0
        %1286 = vmatpush1.msra.mxu0 0.0
        %1287 = vmatprep.subr.mxu0 0.0
        %1288 = vmatpush1.msra.mxu0 0.0
        %1289 = vmatprep.subr.mxu0 0.0
        %1290 = vmatpush1.msra.mxu0 0.0
        %1291 = vmatprep.subr.mxu0 0.0
        %1292 = vmatpush1.msra.mxu0 0.0
        %1293 = vmatprep.subr.mxu0 0.0
        %1294 = vmatpush1.msra.mxu0 0.0
        %1295 = vmatprep.subr.mxu0 0.0
        %1296 = vmatpush1.msra.mxu0 0.0
        %1297 = vmatprep.subr.mxu0 0.0
        %1298 = vmatpush1.msra.mxu0 0.0
        %1299 = vmatprep.subr.mxu0 0.0
        %1300 = vmatpush1.msra.mxu0 0.0
        %1301 = vmatprep.subr.mxu0 0.0
        %1302 = vmatpush1.msra.mxu0 0.0
        %1303 = vmatprep.subr.mxu0 0.0
        %1304 = vmatpush1.msra.mxu0 0.0
        %1305 = vmatprep.subr.mxu0 0.0
        %1306 = vmatpush1.msra.mxu0 0.0
        %1307 = vmatprep.subr.mxu0 0.0
        %1308 = vmatpush1.msra.mxu0 0.0
        %1309 = vmatprep.subr.mxu0 0.0
        %1310 = vmatpush1.msra.mxu0 0.0
        %1311 = vmatprep.subr.mxu0 0.0
        %1312 = vmatpush1.msra.mxu0 0.0
        %1313 = vmatprep.subr.mxu0 0.0
        %1314 = vmatpush1.msra.mxu0 0.0
        %1315 = vmatprep.subr.mxu0 0.0
        %1316 = vmatpush1.msra.mxu0 0.0
        %1317 = vmatprep.subr.mxu0 0.0
        %1318 = vmatpush1.msra.mxu0 0.0
        %1319 = vmatprep.subr.mxu0 0.0
        %1320 = vmatpush1.msra.mxu0 0.0
        %1321 = vmatprep.subr.mxu0 0.0
        %1322 = vmatpush1.msra.mxu0 0.0
        %1323 = vmatprep.subr.mxu0 0.0
        %1324 = vmatpush1.msra.mxu0 0.0
        %1325 = vmatprep.subr.mxu0 0.0
        %1326 = vmatpush1.msra.mxu0 0.0
        %1327 = vmatprep.subr.mxu0 0.0
        %1328 = vmatpush1.msra.mxu0 0.0
        %1329 = vmatprep.subr.mxu0 0.0
        %1330 = vmatpush1.msra.mxu0 0.0
        %1331 = vmatprep.mubr.f32.mxu0 0.0
        %1332 = vmatmul.mubr.f32.gmra.mrb[0].mxu0 %v1253
        %v1333 = vpop.f32.mrb[0].mxu0
        %v1334 = vadd.f32 %v1250, %v1333
        %v1335 = vpop.f32.mrb[0].mxu0
        %v1336 = vadd.f32 %v1250, %v1335
        %1337 = vdwg.mxu0
        %1338 = vmatprep.subr.mxu0 %v1236
        %1339 = vmatpush1.msra.mxu0 %v1235
        %1340 = vmatprep.subr.mxu0 %v1240
        %1341 = vmatpush1.msra.mxu0 %v1239
        %1342 = vmatprep.subr.mxu0 %v1265
        %1343 = vmatpush1.msra.mxu0 %v1262
        %1344 = vmatprep.subr.mxu0 0.0
        %1345 = vmatpush1.msra.mxu0 0.0
        %1346 = vmatprep.subr.mxu0 0.0
        %1347 = vmatpush1.msra.mxu0 0.0
        %1348 = vmatprep.subr.mxu0 0.0
        %1349 = vmatpush1.msra.mxu0 0.0
        %1350 = vmatprep.subr.mxu0 0.0
        %1351 = vmatpush1.msra.mxu0 0.0
        %1352 = vmatprep.subr.mxu0 0.0
        %1353 = vmatpush1.msra.mxu0 0.0
        %1354 = vmatprep.subr.mxu0 0.0
        %1355 = vmatpush1.msra.mxu0 0.0
        %1356 = vmatprep.subr.mxu0 0.0
        %1357 = vmatpush1.msra.mxu0 0.0
        %1358 = vmatprep.subr.mxu0 0.0
        %1359 = vmatpush1.msra.mxu0 0.0
        %1360 = vmatprep.subr.mxu0 0.0
        %1361 = vmatpush1.msra.mxu0 0.0
        %1362 = vmatprep.subr.mxu0 0.0
        %1363 = vmatpush1.msra.mxu0 0.0
        %1364 = vmatprep.subr.mxu0 0.0
        %1365 = vmatpush1.msra.mxu0 0.0
        %1366 = vmatprep.subr.mxu0 0.0
        %1367 = vmatpush1.msra.mxu0 0.0
        %1368 = vmatprep.subr.mxu0 0.0
        %1369 = vmatpush1.msra.mxu0 0.0
        %1370 = vmatprep.subr.mxu0 0.0
        %1371 = vmatpush1.msra.mxu0 0.0
        %1372 = vmatprep.subr.mxu0 0.0
        %1373 = vmatpush1.msra.mxu0 0.0
        %1374 = vmatprep.subr.mxu0 0.0
        %1375 = vmatpush1.msra.mxu0 0.0
        %1376 = vmatprep.subr.mxu0 0.0
        %1377 = vmatpush1.msra.mxu0 0.0
        %1378 = vmatprep.subr.mxu0 0.0
        %1379 = vmatpush1.msra.mxu0 0.0
        %1380 = vmatprep.subr.mxu0 0.0
        %1381 = vmatpush1.msra.mxu0 0.0
        %1382 = vmatprep.subr.mxu0 0.0
        %1383 = vmatpush1.msra.mxu0 0.0
        %1384 = vmatprep.subr.mxu0 0.0
        %1385 = vmatpush1.msra.mxu0 0.0
        %1386 = vmatprep.subr.mxu0 0.0
        %1387 = vmatpush1.msra.mxu0 0.0
        %1388 = vmatprep.subr.mxu0 0.0
        %1389 = vmatpush1.msra.mxu0 0.0
        %1390 = vmatprep.subr.mxu0 0.0
        %1391 = vmatpush1.msra.mxu0 0.0
        %1392 = vmatprep.subr.mxu0 0.0
        %1393 = vmatpush1.msra.mxu0 0.0
        %1394 = vmatprep.subr.mxu0 0.0
        %1395 = vmatpush1.msra.mxu0 0.0
        %1396 = vmatprep.subr.mxu0 0.0
        %1397 = vmatpush1.msra.mxu0 0.0
        %1398 = vmatprep.subr.mxu0 0.0
        %1399 = vmatpush1.msra.mxu0 0.0
        %1400 = vmatprep.subr.mxu0 0.0
        %1401 = vmatpush1.msra.mxu0 0.0
        %1402 = vmatprep.mubr.f32.mxu0 0.0
        %1403 = vmatmul.mubr.f32.gmra.mrb[0].mxu0 %v1253
        %v1404 = vpop.f32.mrb[0].mxu0
        %v1405 = vadd.f32 %v1250, %v1404
        %v1406 = vpop.f32.mrb[0].mxu0
        %v1407 = vadd.f32 %v1250, %v1406
        %1408 = vdwg.mxu0
        %v1413 = vcombine.low %v1334, %v1336
        %v1414 = vcombine.low %v1405, %v1407
        %v1416 = vunpack.c.l.s4 1983009808
        %v1417 = vunpack.c.0.s8 %v1416
        %v1418 = vlaneseq
        %v1419 = vshrl.u32 %v1418, 7
        %v1420 = vsub.s32 %v1417, %v1419
        %v1421 = vrot.slane %v1413, %v1420
        %v1423 = vunpack.c.l.s4 1983009808
        %v1424 = vunpack.c.0.s8 %v1423
        %v1425 = vlaneseq
        %v1426 = vshrl.u32 %v1425, 7
        %v1427 = vsub.s32 %v1424, %v1426
        %v1428 = vrot.slane %v1414, %v1427
        %v1429 = vcombine.low %v1421, %v1428
        %1431 = vst [vmem:[%s419] sm:$0xff] %v1429
        %s1432 = sand.u32 %s296, 1
        %s1433 = scalar_lea.sflag [#allocation3], %s1432
        %s1434 = sand.u32 %s296, 1
        %s1435 = smul.addr %s1434, 8
        %s1436 = scalar_lea.vmem [#allocation2], %s1435
        // Predicated region
        $region69: #{sequential_model_forward.1} parent=67 // pred_check
          %p1437 = pneg %p306
        $region70: #{sequential_model_forward.1} parent=67 // pred_check_branch
          %1439 = sbr.rel (%p1437) target = $region72
        $region71: #{sequential_model_forward.1} parent=67 // pred_region
          %s1440 = smul.u32 4, %s26
          %s1442 = ssub.s32 128, 128
          %1443 = vsyncadd %s1433, %s1442
          %s1444 = smul.addr %s1440, 32
          %s1445 = scalar_lea.hbm %s12, %s1444
          %s1447 = sshll.u32 %s1436, 4
          %s1448 = int_to_ptr.vmem [resolvable:$true] %s1447
          %1450 = dma.vmem_to_hbm [thread:$0]  %s1448, 128, %s1445, %s1433
        $region72: #{sequential_model_forward.1} parent=67 // pred_fallthru
          _
      $region68: #{sequential_model_forward.1} parent=5 // pred_fallthru
        _
      %p1451 = scmp.le.s32.totalorder 2, %s21
      // Predicated region
      $region73: #{sequential_model_forward.1} parent=5 // pred_check
        %p1452 = pneg %p1451
      $region74: #{sequential_model_forward.1} parent=5 // pred_check_branch
        %1454 = sbr.rel (%p1452) target = $region76
      $region75: #{sequential_model_forward.1} parent=5 // pred_region
        %s1455 = ssub.s32 %s21, 2
        // Predicated region
        $region77: #{sequential_model_forward.1} parent=75 // pred_check
          %p1456 = pneg %p312
        $region78: #{sequential_model_forward.1} parent=75 // pred_check_branch
          %1458 = sbr.rel (%p1456) target = $region80
        $region79: #{sequential_model_forward.1} parent=75 // pred_region
          %s1459 = sand.u32 %s297, 1
          %s1460 = scalar_lea.sflag [#allocation3], %s1459
          %s1461 = sand.u32 %s297, 1
          %s1462 = smul.addr %s1461, 8
          %s1463 = scalar_lea.vmem [#allocation2], %s1462
          %1464 = dma.done %s1460, 128
        $region80: #{sequential_model_forward.1} parent=75 // pred_fallthru
          _
      $region76: #{sequential_model_forward.1} parent=5 // pred_fallthru
        _
    $region6: #{sequential_model_forward.1} parent=1 // loop_footer
      %s25 = sadd.s32 1, %s21
    $region7: #{sequential_model_forward.1} parent=1 // loop_footer_branch
      %20 = sbr.rel target = $region3
    $region8: #{sequential_model_forward.1} parent=1 // loop_exit
      _
    %1465 = vsyncpa [#allocation3], 1
    %s1466 = scalar_lea.sflag [#allocation3], 1
    %1467 = vsyncpa %s1466, 1

</llo_original>
